<compile_context>
chip_gen: v7x
topology: tpu7x:2x2x1
jax: 0.10.0
libtpu: 0.0.40
codegen_flags: <defaults>
</compile_context>

<pallas_src>
import functools

import jax
import jax.numpy as jnp
from jax import lax
from jax.experimental import pallas as pl
from jax.experimental.pallas import tpu as pltpu

_LANE = 128  # lane width; the augmented input is padded to this many feature lanes


def _round_up(v, m):
    return ((v + m - 1) // m) * m


def _embedding_kernel(xaug_ref, wcat_ref, waug_ref, floor_ref, out_ref, *,
                      bases, cat_sizes):
    """One batch tile; all per-feature work fused into two aligned MXU matmuls.

    xaug_ref  : (tb, 128)   f32  [cat codes | num values | 1.0 | 0-pad]
    wcat_ref  : (Kc, F*D)   f32  block-diagonal categorical embedding tables
    waug_ref  : (128, F*D)  f32  num Linear(1,D) weights + bias row (code rows = 0)
    floor_ref : (1, F*D)    f32  -inf on cat columns, 0 on num columns (ReLU)
    out_ref   : (tb, F*D)   f32  lane-folded combined output
    """
    x = xaug_ref[...]                                   # (tb, 128)
    tb = x.shape[0]
    kc = wcat_ref.shape[0]

    # One hoisted lane-iota; one-hot accumulated as bool with OR (no zeros init,
    # first compare assigns; single cast to f32 at the end).
    lane = lax.broadcasted_iota(jnp.int32, (tb, kc), 1)
    hot = None
    for i, (base, size) in enumerate(zip(bases, cat_sizes)):
        code = x[:, i:i + 1].astype(jnp.int32)          # (tb, 1) category code
        code = jnp.clip(code, 0, size - 1)              # guard OOB codes (torch raises)
        hit = lane == (code + base)
        hot = hit if hot is None else jnp.logical_or(hot, hit)
    onehot = hot.astype(jnp.float32)

    # 1) Exact categorical gather as a one-hot matmul over the block-diagonal tables.
    res = jnp.dot(onehot, wcat_ref[...],
                  preferred_element_type=jnp.float32,
                  precision=lax.Precision.HIGHEST)
    # 2) Numerical Linear(1, D) + bias folded into a single aligned matmul: x_aug's
    #    code lanes hit zero rows, its constant-1 lane picks up the packed bias row.
    res = res + jnp.dot(x, waug_ref[...],
                        preferred_element_type=jnp.float32,
                        precision=lax.Precision.HIGHEST)

    # ReLU on numerical columns only, via the per-column floor (-inf on cat columns).
    out_ref[...] = jnp.maximum(res, floor_ref[...])


def pack_embedding_params(cat_tables, num_w, num_b):
    """Pack per-feature parameters into the fused kernel operands.

    cat_tables : list of (cats[i], D) f32 embedding tables (nn.Embedding.weight)
    num_w      : (no_num, D) f32 Linear(1, D) weights (one row per num feature)
    num_b      : (no_num, D) f32 Linear biases
    Returns (w_cat, w_aug, relu_floor, bases, cat_sizes).
    """
    no_cat = len(cat_tables)
    no_num, d = num_w.shape
    f_tot = no_cat + no_num
    assert no_cat >= 1
    assert f_tot + 1 <= _LANE, "feature count (+bias lane) must fit in 128 lanes"
    fd = f_tot * d

    # Block-diagonal categorical tables; contraction dim padded to a lane multiple.
    k_raw = sum(int(t.shape[0]) for t in cat_tables)
    k_cat = max(_LANE, _round_up(k_raw, _LANE))
    w_cat = jnp.zeros((k_cat, fd), jnp.float32)
    bases, cat_sizes = [], []
    row = 0
    for i, tab in enumerate(cat_tables):
        v = int(tab.shape[0])
        bases.append(row)
        cat_sizes.append(v)
        w_cat = w_cat.at[row:row + v, i * d:(i + 1) * d].set(tab.astype(jnp.float32))
        row += v

    # Augmented numerical weight, consumed directly by x_aug = [codes|num|1|0-pad]:
    #   rows [0, no_cat)  : 0 (raw category-code lanes contribute nothing)
    #   rows [no_cat, F)  : Linear(1, D) weight of num feature f in its column slot
    #   row  F            : packed bias (bias folded into the matmul)
    w_aug = jnp.zeros((_LANE, fd), jnp.float32)
    for f in range(no_num):
        col = (no_cat + f) * d
        w_aug = w_aug.at[no_cat + f, col:col + d].set(num_w[f].astype(jnp.float32))
        w_aug = w_aug.at[f_tot, col:col + d].set(num_b[f].astype(jnp.float32))

    relu_floor = jnp.concatenate(
        [jnp.full((1, no_cat * d), -jnp.inf, jnp.float32),
         jnp.zeros((1, no_num * d), jnp.float32)], axis=1)

    return w_cat, w_aug, relu_floor, tuple(bases), tuple(cat_sizes)


def make_embedding_forward(w_cat, w_aug, relu_floor, bases, cat_sizes, *,
                           no_cat, no_num, embed_dim, max_tile_b=512):
    """Returns a jitted fn(x) reproducing Embedding.forward.

    x : (bs, no_cat + no_num) — first no_cat columns are category codes (as floats).
    """
    k_cat, fd = w_cat.shape
    f_tot = no_cat + no_num
    assert fd == f_tot * embed_dim

    kernel = functools.partial(_embedding_kernel, bases=bases, cat_sizes=cat_sizes)

    def forward(x):
        bs = x.shape[0]
        # Single augmented input [x | 1.0 | 0-pad] padded to 128 lanes.  Replaces the
        # previous two wrapper-side column-split/cast ops (codes are cast in-kernel)
        # and makes the bias lane + numerical-matmul contraction fully lane-aligned.
        x_aug = jnp.concatenate(
            [x.astype(jnp.float32),
             jnp.ones((bs, 1), jnp.float32),
             jnp.zeros((bs, _LANE - f_tot - 1), jnp.float32)], axis=1)

        # Tile choice: large batches get >=2 grid steps (v7x megacore + pipelining);
        # small batches keep one big tile (grid-step overhead dominates on 1-TC chips).
        if bs >= 64:
            tb = min(max_tile_b, _round_up((bs + 1) // 2, 8))
        else:
            tb = bs
        grid = (pl.cdiv(bs, tb),)

        # Explicit VMEM budget: double-buffered batch tiles + (conservatively 2x) the
        # grid-invariant weights, plus headroom.
        tile_bytes = 4 * tb * (_LANE + fd)
        weight_bytes = 4 * (k_cat * fd + _LANE * fd + fd)
        vmem_limit = int(min(64 * 2 ** 20, 2 * (tile_bytes + weight_bytes) + 4 * 2 ** 20))

        out_flat = pl.pallas_call(
            kernel,
            out_shape=jax.ShapeDtypeStruct((bs, fd), jnp.float32),
            grid_spec=pltpu.PrefetchScalarGridSpec(
                num_scalar_prefetch=0,
                grid=grid,
                in_specs=[
                    pl.BlockSpec((tb, _LANE), lambda b: (b, 0)),   # augmented input tile
                    pl.BlockSpec((k_cat, fd), lambda b: (0, 0)),   # resident cat tables
                    pl.BlockSpec((_LANE, fd), lambda b: (0, 0)),   # resident num weights
                    pl.BlockSpec((1, fd), lambda b: (0, 0)),       # resident ReLU floor
                ],
                out_specs=pl.BlockSpec((tb, fd), lambda b: (b, 0)),
            ),
            compiler_params=pltpu.CompilerParams(
                dimension_semantics=("parallel",),
                vmem_limit_bytes=vmem_limit),
        )(x_aug, w_cat, w_aug, relu_floor)

        # Free row-major reshape == torch.stack(output, dim=1) layout.
        return out_flat.reshape(bs, f_tot, embed_dim)

    return jax.jit(forward)


if __name__ == "__main__":
    # Small, deterministic synthetic problem.
    embed_dim = 32
    cats = [5, 7, 4]          # per-categorical-feature vocabulary sizes
    no_cat = len(cats)
    no_num = 4
    bs = 8

    key = jax.random.PRNGKey(0)
    k_tab, k_w, k_b, k_idx, k_num = jax.random.split(key, 5)

    tab_keys = jax.random.split(k_tab, no_cat)
    cat_tables = [jax.random.normal(tab_keys[i], (cats[i], embed_dim), jnp.float32)
                  for i in range(no_cat)]
    num_w = jax.random.normal(k_w, (no_num, embed_dim), jnp.float32) * 0.5
    num_b = jax.random.normal(k_b, (no_num, embed_dim), jnp.float32) * 0.5

    # Input: first no_cat columns hold integer codes (as floats, like .long() in torch).
    idx_cols = jnp.stack(
        [jax.random.randint(jax.random.fold_in(k_idx, i), (bs,), 0, cats[i])
         for i in range(no_cat)], axis=1).astype(jnp.float32)        # (bs, no_cat)
    num_cols = jax.random.normal(k_num, (bs, no_num), jnp.float32)   # (bs, no_num)
    x = jnp.concatenate([idx_cols, num_cols], axis=1)                # (bs, no_cat+no_num)

    w_cat, w_aug, relu_floor, bases, cat_sizes = pack_embedding_params(
        cat_tables, num_w, num_b)
    fwd = make_embedding_forward(w_cat, w_aug, relu_floor, bases, cat_sizes,
                                 no_cat=no_cat, no_num=no_num, embed_dim=embed_dim)

    out = jax.block_until_ready(fwd(x))

    # Pure-JAX reference.
    idx = x[:, :no_cat].astype(jnp.int32)
    xnum = x[:, no_cat:]
    ref_cat = jnp.stack([cat_tables[i][idx[:, i]] for i in range(no_cat)], axis=1)
    ref_num = jnp.maximum(xnum[:, :, None] * num_w[None] + num_b[None], 0.0)
    ref = jnp.concatenate([ref_cat, ref_num], axis=1)

    assert out.shape == (bs, no_cat + no_num, embed_dim), out.shape
    assert out.dtype == jnp.float32
    assert jnp.allclose(out, ref, atol=1e-5, rtol=1e-5), float(jnp.abs(out - ref).max())

    print("KERNEL_OK")
</pallas_src>

<mosaic_0001>
module attributes {stable_mosaic.version = 11 : i64} {
  func.func @_embedding_kernel(%arg0: i32, %arg1: memref<8x128xf32, #tpu.memory_space<vmem>>, %arg2: memref<128x224xf32, #tpu.memory_space<vmem>>, %arg3: memref<128x224xf32, #tpu.memory_space<vmem>>, %arg4: memref<1x224xf32, #tpu.memory_space<vmem>>, %arg5: memref<8x224xf32, #tpu.memory_space<vmem>>) attributes {dimension_semantics = [#tpu.dimension_semantics<parallel>], iteration_bounds = array<i64: 1>, scalar_prefetch = 0 : i64, scratch_operands = 0 : i64, tpu.core_type = #tpu.core_type<tc>, window_params = [{transform_indices = @transform_0, window_bounds = array<i64: 8, 128>}, {pipeline_mode = #tpu.pipeline_mode<synchronous>, transform_indices = @transform_1, window_bounds = array<i64: 128, 224>}, {pipeline_mode = #tpu.pipeline_mode<synchronous>, transform_indices = @transform_2, window_bounds = array<i64: 128, 224>}, {pipeline_mode = #tpu.pipeline_mode<synchronous>, transform_indices = @transform_3, window_bounds = array<i64: 1, 224>}, {transform_indices = @transform_4, window_bounds = array<i64: 8, 224>}]} {
    %c0 = arith.constant 0 : index
    %c0_0 = arith.constant 0 : index
    %0 = vector.load %arg1[%c0, %c0_0] : memref<8x128xf32, #tpu.memory_space<vmem>>, vector<8x128xf32>
    %1 = tpu.iota {dimensions = array<i32: 1>} : vector<8x128xi32>
    %2 = vector.extract_strided_slice %0 {offsets = [0, 0], sizes = [8, 1], strides = [1, 1]} : vector<8x128xf32> to vector<8x1xf32>
    %3 = arith.fptosi %2 : vector<8x1xf32> to vector<8x1xi32>
    %c0_i32 = arith.constant 0 : i32
    %c4_i32 = arith.constant 4 : i32
    %4 = vector.broadcast %c0_i32 : i32 to vector<8x1xi32>
    %5 = arith.maxsi %4, %3 : vector<8x1xi32>
    %6 = vector.broadcast %c4_i32 : i32 to vector<8x1xi32>
    %7 = arith.minsi %6, %5 : vector<8x1xi32>
    %c0_i32_1 = arith.constant 0 : i32
    %8 = vector.broadcast %c0_i32_1 : i32 to vector<8x1xi32>
    %9 = arith.addi %7, %8 : vector<8x1xi32>
    %10 = vector.broadcast %9 : vector<8x1xi32> to vector<8x128xi32>
    %11 = arith.cmpi eq, %1, %10 : vector<8x128xi32>
    %12 = vector.extract_strided_slice %0 {offsets = [0, 1], sizes = [8, 1], strides = [1, 1]} : vector<8x128xf32> to vector<8x1xf32>
    %13 = arith.fptosi %12 : vector<8x1xf32> to vector<8x1xi32>
    %c0_i32_2 = arith.constant 0 : i32
    %c6_i32 = arith.constant 6 : i32
    %14 = vector.broadcast %c0_i32_2 : i32 to vector<8x1xi32>
    %15 = arith.maxsi %14, %13 : vector<8x1xi32>
    %16 = vector.broadcast %c6_i32 : i32 to vector<8x1xi32>
    %17 = arith.minsi %16, %15 : vector<8x1xi32>
    %c5_i32 = arith.constant 5 : i32
    %18 = vector.broadcast %c5_i32 : i32 to vector<8x1xi32>
    %19 = arith.addi %17, %18 : vector<8x1xi32>
    %20 = vector.broadcast %19 : vector<8x1xi32> to vector<8x128xi32>
    %21 = arith.cmpi eq, %1, %20 : vector<8x128xi32>
    %22 = arith.ori %11, %21 : vector<8x128xi1>
    %23 = vector.extract_strided_slice %0 {offsets = [0, 2], sizes = [8, 1], strides = [1, 1]} : vector<8x128xf32> to vector<8x1xf32>
    %24 = arith.fptosi %23 : vector<8x1xf32> to vector<8x1xi32>
    %c0_i32_3 = arith.constant 0 : i32
    %c3_i32 = arith.constant 3 : i32
    %25 = vector.broadcast %c0_i32_3 : i32 to vector<8x1xi32>
    %26 = arith.maxsi %25, %24 : vector<8x1xi32>
    %27 = vector.broadcast %c3_i32 : i32 to vector<8x1xi32>
    %28 = arith.minsi %27, %26 : vector<8x1xi32>
    %c12_i32 = arith.constant 12 : i32
    %29 = vector.broadcast %c12_i32 : i32 to vector<8x1xi32>
    %30 = arith.addi %28, %29 : vector<8x1xi32>
    %31 = vector.broadcast %30 : vector<8x1xi32> to vector<8x128xi32>
    %32 = arith.cmpi eq, %1, %31 : vector<8x128xi32>
    %33 = arith.ori %22, %32 : vector<8x128xi1>
    %34 = arith.extui %33 : vector<8x128xi1> to vector<8x128xi32>
    %35 = arith.sitofp %34 : vector<8x128xi32> to vector<8x128xf32>
    %c0_4 = arith.constant 0 : index
    %c0_5 = arith.constant 0 : index
    %36 = vector.load %arg2[%c0_4, %c0_5] : memref<128x224xf32, #tpu.memory_space<vmem>>, vector<128x224xf32>
    %cst = arith.constant dense<0.000000e+00> : vector<8x224xf32>
    %37 = tpu.matmul %35, %36, %cst {dimension_numbers = #tpu.dot_dimension_numbers<[1], [0], [0], [1], [0, 0, 1, 1], [], []>, precision = #tpu.contract_precision<fp32>} : vector<8x128xf32>, vector<128x224xf32>, vector<8x224xf32> -> vector<8x224xf32>
    %c0_6 = arith.constant 0 : index
    %c0_7 = arith.constant 0 : index
    %38 = vector.load %arg3[%c0_6, %c0_7] : memref<128x224xf32, #tpu.memory_space<vmem>>, vector<128x224xf32>
    %cst_8 = arith.constant dense<0.000000e+00> : vector<8x224xf32>
    %39 = tpu.matmul %0, %38, %cst_8 {dimension_numbers = #tpu.dot_dimension_numbers<[1], [0], [0], [1], [0, 0, 1, 1], [], []>, precision = #tpu.contract_precision<fp32>} : vector<8x128xf32>, vector<128x224xf32>, vector<8x224xf32> -> vector<8x224xf32>
    %40 = arith.addf %37, %39 : vector<8x224xf32>
    %c0_9 = arith.constant 0 : index
    %c0_10 = arith.constant 0 : index
    %41 = vector.load %arg4[%c0_9, %c0_10] : memref<1x224xf32, #tpu.memory_space<vmem>>, vector<1x224xf32>
    %42 = vector.broadcast %41 : vector<1x224xf32> to vector<8x224xf32>
    %43 = arith.maximumf %40, %42 : vector<8x224xf32>
    %c0_11 = arith.constant 0 : index
    %c0_12 = arith.constant 0 : index
    %44 = vector.load %arg5[%c0_11, %c0_12] : memref<8x224xf32, #tpu.memory_space<vmem>>, vector<8x224xf32>
    tpu.vector_store %arg5[%c0_11, %c0_12], %43 {strides = array<i32>} : memref<8x224xf32, #tpu.memory_space<vmem>>, vector<8x224xf32>,
    return
  }
  func.func @transform_0(%arg0: i32) -> (i32, i32) {
    %c0_i32 = arith.constant 0 : i32
    %c0_i32_0 = arith.constant 0 : i32
    return %arg0, %c0_i32 : i32, i32
  }
  func.func @transform_1(%arg0: i32) -> (i32, i32) {
    %c0_i32 = arith.constant 0 : i32
    %c0_i32_0 = arith.constant 0 : i32
    %c0_i32_1 = arith.constant 0 : i32
    return %c0_i32, %c0_i32_0 : i32, i32
  }
  func.func @transform_2(%arg0: i32) -> (i32, i32) {
    %c0_i32 = arith.constant 0 : i32
    %c0_i32_0 = arith.constant 0 : i32
    %c0_i32_1 = arith.constant 0 : i32
    return %c0_i32, %c0_i32_0 : i32, i32
  }
  func.func @transform_3(%arg0: i32) -> (i32, i32) {
    %c0_i32 = arith.constant 0 : i32
    %c0_i32_0 = arith.constant 0 : i32
    %c0_i32_1 = arith.constant 0 : i32
    return %c0_i32, %c0_i32_0 : i32, i32
  }
  func.func @transform_4(%arg0: i32) -> (i32, i32) {
    %c0_i32 = arith.constant 0 : i32
    %c0_i32_0 = arith.constant 0 : i32
    return %arg0, %c0_i32 : i32, i32
  }
}

</mosaic_0001>

<llo_original>
// kernel: forward.1
$region0: #{forward.1}
  #allocation0 [shape = 'u32[]', space=smem, size = 0x4, offset = 0x4, fixed_abs, tag = 'smem constant byte address 0x4 - core index']
  #allocation1 [shape = 'u32[144,128]{1,0:T(1,128)}', space=vmem, size = 0x12000, scoped, tag = 'internal scratch']
  %s0 = inlined_call_operand.vmem [shape: f32[8,128], index: 0, kind: input, shape index: {}]
  %s1 = inlined_call_operand.hbm [shape: f32[128,224], index: 1, kind: input, shape index: {}]
  %s2 = inlined_call_operand.hbm [shape: f32[128,224], index: 2, kind: input, shape index: {}]
  %s3 = inlined_call_operand.vmem [shape: f32[1,224], index: 3, kind: input, shape index: {}]
  %s4 = inlined_call_operand.vmem [shape: f32[8,224], index: 4, kind: output, shape index: {}]
  %s5 = sld [smem:[#allocation0]]
  $region34: #{forward.1} parent=0
    _
  %s7 = ssub.s32 1, %s5
  %s8 = scalar_select 0, %s7, %s5
  $region1: #{forward.1} parent=0
    #allocation2 [shape = 'u8[131072]{0}', space=vmem, size = 0x20000, scoped, tag = 'input window, operand 1, single buffered']
    #allocation3 [shape = 's32[1]{0}', space=sflag, size = 0x4, scoped, tag = 'scoped memory for forward.1']
    #allocation4 [shape = 'u8[131072]{0}', space=vmem, size = 0x20000, scoped, tag = 'input window, operand 2, single buffered']
    #allocation5 [shape = 's32[1]{0}', space=sflag, size = 0x4, scoped, tag = 'scoped memory for forward.1']
    %9 = vsyncpa [#allocation3], 0
    %10 = vsyncpa [#allocation5], 0
    // Predicated region
    $region2: #{forward.1} parent=1 // pred_check
      _
    $region3: #{forward.1} parent=1 // pred_check_branch
      %12 = sbr.rel (0) target = $region5
    $region4: #{forward.1} parent=1 // pred_region
      _
    $region5: #{forward.1} parent=1 // pred_fallthru
      _
    // Predicated region
    $region6: #{forward.1} parent=1 // pred_check
      _
    $region7: #{forward.1} parent=1 // pred_check_branch
      %14 = sbr.rel (0) target = $region9
    $region8: #{forward.1} parent=1 // pred_region
      %s16 = ssub.s32 4096, 4096
      %17 = vsyncadd [#allocation3], %s16
      %s18 = sshll.u32 [#allocation2], 4
      %s19 = int_to_ptr.vmem [resolvable:$true] %s18
      %24 = dma.hbm_to_vmem [thread:$0]  %s1, 4096, %s19, [#allocation3], 256, 256, 16
    $region9: #{forward.1} parent=1 // pred_fallthru
      _
    // Predicated region
    $region10: #{forward.1} parent=1 // pred_check
      _
    $region11: #{forward.1} parent=1 // pred_check_branch
      %26 = sbr.rel (0) target = $region13
    $region12: #{forward.1} parent=1 // pred_region
      %s28 = ssub.s32 4096, 4096
      %29 = vsyncadd [#allocation5], %s28
      %s30 = sshll.u32 [#allocation4], 4
      %s31 = int_to_ptr.vmem [resolvable:$true] %s30
      %36 = dma.hbm_to_vmem [thread:$0]  %s2, 4096, %s31, [#allocation5], 256, 256, 16
    $region13: #{forward.1} parent=1 // pred_fallthru
      _
    // Predicated region
    $region14: #{forward.1} parent=1 // pred_check
      _
    $region15: #{forward.1} parent=1 // pred_check_branch
      %38 = sbr.rel (0) target = $region17
    $region16: #{forward.1} parent=1 // pred_region
      _
    $region17: #{forward.1} parent=1 // pred_fallthru
      _
    // Predicated region
    $region18: #{forward.1} parent=1 // pred_check
      _
    $region19: #{forward.1} parent=1 // pred_check_branch
      %40 = sbr.rel (0) target = $region21
    $region20: #{forward.1} parent=1 // pred_region
      %41 = dma.done [#allocation3], 4096
    $region21: #{forward.1} parent=1 // pred_fallthru
      _
    // Predicated region
    $region22: #{forward.1} parent=1 // pred_check
      _
    $region23: #{forward.1} parent=1 // pred_check_branch
      %43 = sbr.rel (0) target = $region25
    $region24: #{forward.1} parent=1 // pred_region
      %44 = dma.done [#allocation5], 4096
    $region25: #{forward.1} parent=1 // pred_fallthru
      _
    %v45 = vld [vmem:[%s0] sm:$0xff]
    %v46 = vlaneseq
    %v47 = vand.u32 %v46, 127
    %v48 = vcvt.f32.s32.to.zero.pseudo %v45
    %vm49 = vcmp.gt.s32.totalorder %v48, 0
    %v50 = vsel %vm49, %v48, 0
    %vm51 = vcmp.lt.s32.totalorder %v50, 4
    %v52 = vsel %vm51, %v50, 4
    %53 = vset.pattern.permute.xlu0 0
    %54 = vperm.xlu0 %53, %v52
    %v55 = vpop.permute.xlu0 %54
    %vm56 = vcmp.eq.s32.totalorder %v47, %v55
    %vm57 = vcmp.lt.s32.totalorder %v50, 6
    %v58 = vsel %vm57, %v50, 6
    %v59 = vadd.s32 %v58, 5
    %60 = vset.pattern.permute.xlu0 1
    %61 = vperm.xlu0 %60, %v59
    %v62 = vpop.permute.xlu0 %61
    %vm63 = vcmp.eq.s32.totalorder %v47, %v62
    %vm64 = vmor %vm56, %vm63
    %vm65 = vcmp.lt.s32.totalorder %v50, 3
    %v66 = vsel %vm65, %v50, 3
    %v67 = vadd.s32 %v66, 12
    %68 = vset.pattern.permute.xlu0 2
    %69 = vperm.xlu0 %68, %v67
    %v70 = vpop.permute.xlu0 %69
    %vm71 = vcmp.eq.s32.totalorder %v47, %v70
    %vm72 = vmor %vm64, %vm71
    %v73 = vsel %vm72, 1, 0
    %v74 = vcvt.s32.f32 %v73
    %v75 = vld [vmem:[#allocation2] sm:$0xff]
    %v76 = vld [vmem:[#allocation2 + $0x8] sm:$0xff]
    %v77 = vld [vmem:[#allocation2 + $0x10] sm:$0xff]
    %v78 = vld [vmem:[#allocation2 + $0x18] sm:$0xff]
    %v79 = vld [vmem:[#allocation2 + $0x20] sm:$0xff]
    %v80 = vld [vmem:[#allocation2 + $0x28] sm:$0xff]
    %v81 = vld [vmem:[#allocation2 + $0x30] sm:$0xff]
    %v82 = vld [vmem:[#allocation2 + $0x38] sm:$0xff]
    %v83 = vld [vmem:[#allocation2 + $0x40] sm:$0xff]
    %v84 = vld [vmem:[#allocation2 + $0x48] sm:$0xff]
    %v85 = vld [vmem:[#allocation2 + $0x50] sm:$0xff]
    %v86 = vld [vmem:[#allocation2 + $0x58] sm:$0xff]
    %v87 = vld [vmem:[#allocation2 + $0x60] sm:$0xff]
    %v88 = vld [vmem:[#allocation2 + $0x68] sm:$0xff]
    %v89 = vld [vmem:[#allocation2 + $0x70] sm:$0xff]
    %v90 = vld [vmem:[#allocation2 + $0x78] sm:$0xff]
    %v91 = vld [vmem:[#allocation2 + $0x80] sm:$0xff]
    %v92 = vld [vmem:[#allocation2 + $0x88] sm:$0xff]
    %v93 = vld [vmem:[#allocation2 + $0x90] sm:$0xff]
    %v94 = vld [vmem:[#allocation2 + $0x98] sm:$0xff]
    %v95 = vld [vmem:[#allocation2 + $0xa0] sm:$0xff]
    %v96 = vld [vmem:[#allocation2 + $0xa8] sm:$0xff]
    %v97 = vld [vmem:[#allocation2 + $0xb0] sm:$0xff]
    %v98 = vld [vmem:[#allocation2 + $0xb8] sm:$0xff]
    %v99 = vld [vmem:[#allocation2 + $0xc0] sm:$0xff]
    %v100 = vld [vmem:[#allocation2 + $0xc8] sm:$0xff]
    %v101 = vld [vmem:[#allocation2 + $0xd0] sm:$0xff]
    %v102 = vld [vmem:[#allocation2 + $0xd8] sm:$0xff]
    %v103 = vld [vmem:[#allocation2 + $0xe0] sm:$0xff]
    %v104 = vld [vmem:[#allocation2 + $0xe8] sm:$0xff]
    %v105 = vld [vmem:[#allocation2 + $0xf0] sm:$0xff]
    %v106 = vld [vmem:[#allocation2 + $0xf8] sm:$0xff]
    %v107 = vld [vmem:[#allocation4] sm:$0xff]
    %v108 = vld [vmem:[#allocation4 + $0x8] sm:$0xff]
    %v109 = vld [vmem:[#allocation4 + $0x10] sm:$0xff]
    %v110 = vld [vmem:[#allocation4 + $0x18] sm:$0xff]
    %v111 = vld [vmem:[#allocation4 + $0x20] sm:$0xff]
    %v112 = vld [vmem:[#allocation4 + $0x28] sm:$0xff]
    %v113 = vld [vmem:[#allocation4 + $0x30] sm:$0xff]
    %v114 = vld [vmem:[#allocation4 + $0x38] sm:$0xff]
    %v115 = vld [vmem:[#allocation4 + $0x40] sm:$0xff]
    %v116 = vld [vmem:[#allocation4 + $0x48] sm:$0xff]
    %v117 = vld [vmem:[#allocation4 + $0x50] sm:$0xff]
    %v118 = vld [vmem:[#allocation4 + $0x58] sm:$0xff]
    %v119 = vld [vmem:[#allocation4 + $0x60] sm:$0xff]
    %v120 = vld [vmem:[#allocation4 + $0x68] sm:$0xff]
    %v121 = vld [vmem:[#allocation4 + $0x70] sm:$0xff]
    %v122 = vld [vmem:[#allocation4 + $0x78] sm:$0xff]
    %v123 = vld [vmem:[#allocation4 + $0x80] sm:$0xff]
    %v124 = vld [vmem:[#allocation4 + $0x88] sm:$0xff]
    %v125 = vld [vmem:[#allocation4 + $0x90] sm:$0xff]
    %v126 = vld [vmem:[#allocation4 + $0x98] sm:$0xff]
    %v127 = vld [vmem:[#allocation4 + $0xa0] sm:$0xff]
    %v128 = vld [vmem:[#allocation4 + $0xa8] sm:$0xff]
    %v129 = vld [vmem:[#allocation4 + $0xb0] sm:$0xff]
    %v130 = vld [vmem:[#allocation4 + $0xb8] sm:$0xff]
    %v131 = vld [vmem:[#allocation4 + $0xc0] sm:$0xff]
    %v132 = vld [vmem:[#allocation4 + $0xc8] sm:$0xff]
    %v133 = vld [vmem:[#allocation4 + $0xd0] sm:$0xff]
    %v134 = vld [vmem:[#allocation4 + $0xd8] sm:$0xff]
    %v135 = vld [vmem:[#allocation4 + $0xe0] sm:$0xff]
    %v136 = vld [vmem:[#allocation4 + $0xe8] sm:$0xff]
    %v137 = vld [vmem:[#allocation4 + $0xf0] sm:$0xff]
    %v138 = vld [vmem:[#allocation4 + $0xf8] sm:$0xff]
    %v139 = vand.u32 %v108, 4294901760
    %140 = vmatprep.subr.mxu0 %v139
    %v141 = vand.u32 %v107, 4294901760
    %142 = vmatpush1.msra.mxu0 %v141
    %v143 = vand.u32 %v110, 4294901760
    %144 = vmatprep.subr.mxu0 %v143
    %v145 = vand.u32 %v109, 4294901760
    %146 = vmatpush1.msra.mxu0 %v145
    %v147 = vand.u32 %v112, 4294901760
    %148 = vmatprep.subr.mxu0 %v147
    %v149 = vand.u32 %v111, 4294901760
    %150 = vmatpush1.msra.mxu0 %v149
    %v151 = vand.u32 %v114, 4294901760
    %152 = vmatprep.subr.mxu0 %v151
    %v153 = vand.u32 %v113, 4294901760
    %154 = vmatpush1.msra.mxu0 %v153
    %v155 = vand.u32 %v116, 4294901760
    %156 = vmatprep.subr.mxu0 %v155
    %v157 = vand.u32 %v115, 4294901760
    %158 = vmatpush1.msra.mxu0 %v157
    %v159 = vand.u32 %v118, 4294901760
    %160 = vmatprep.subr.mxu0 %v159
    %v161 = vand.u32 %v117, 4294901760
    %162 = vmatpush1.msra.mxu0 %v161
    %v163 = vand.u32 %v120, 4294901760
    %164 = vmatprep.subr.mxu0 %v163
    %v165 = vand.u32 %v119, 4294901760
    %166 = vmatpush1.msra.mxu0 %v165
    %v167 = vand.u32 %v122, 4294901760
    %168 = vmatprep.subr.mxu0 %v167
    %v169 = vand.u32 %v121, 4294901760
    %170 = vmatpush1.msra.mxu0 %v169
    %v171 = vand.u32 %v124, 4294901760
    %172 = vmatprep.subr.mxu0 %v171
    %v173 = vand.u32 %v123, 4294901760
    %174 = vmatpush1.msra.mxu0 %v173
    %v175 = vand.u32 %v126, 4294901760
    %176 = vmatprep.subr.mxu0 %v175
    %v177 = vand.u32 %v125, 4294901760
    %178 = vmatpush1.msra.mxu0 %v177
    %v179 = vand.u32 %v128, 4294901760
    %180 = vmatprep.subr.mxu0 %v179
    %v181 = vand.u32 %v127, 4294901760
    %182 = vmatpush1.msra.mxu0 %v181
    %v183 = vand.u32 %v130, 4294901760
    %184 = vmatprep.subr.mxu0 %v183
    %v185 = vand.u32 %v129, 4294901760
    %186 = vmatpush1.msra.mxu0 %v185
    %v187 = vand.u32 %v132, 4294901760
    %188 = vmatprep.subr.mxu0 %v187
    %v189 = vand.u32 %v131, 4294901760
    %190 = vmatpush1.msra.mxu0 %v189
    %v191 = vand.u32 %v134, 4294901760
    %192 = vmatprep.subr.mxu0 %v191
    %v193 = vand.u32 %v133, 4294901760
    %194 = vmatpush1.msra.mxu0 %v193
    %v195 = vand.u32 %v136, 4294901760
    %196 = vmatprep.subr.mxu0 %v195
    %v197 = vand.u32 %v135, 4294901760
    %198 = vmatpush1.msra.mxu0 %v197
    %v199 = vand.u32 %v138, 4294901760
    %200 = vmatprep.subr.mxu0 %v199
    %v201 = vand.u32 %v137, 4294901760
    %202 = vmatpush1.msra.mxu0 %v201
    %203 = vmatprep.subr.mxu0 0.0
    %204 = vmatpush1.msra.mxu0 0.0
    %205 = vmatprep.subr.mxu0 0.0
    %206 = vmatpush1.msra.mxu0 0.0
    %207 = vmatprep.subr.mxu0 0.0
    %208 = vmatpush1.msra.mxu0 0.0
    %209 = vmatprep.subr.mxu0 0.0
    %210 = vmatpush1.msra.mxu0 0.0
    %211 = vmatprep.subr.mxu0 0.0
    %212 = vmatpush1.msra.mxu0 0.0
    %213 = vmatprep.subr.mxu0 0.0
    %214 = vmatpush1.msra.mxu0 0.0
    %215 = vmatprep.subr.mxu0 0.0
    %216 = vmatpush1.msra.mxu0 0.0
    %217 = vmatprep.subr.mxu0 0.0
    %218 = vmatpush1.msra.mxu0 0.0
    %219 = vmatprep.subr.mxu0 0.0
    %220 = vmatpush1.msra.mxu0 0.0
    %221 = vmatprep.subr.mxu0 0.0
    %222 = vmatpush1.msra.mxu0 0.0
    %223 = vmatprep.subr.mxu0 0.0
    %224 = vmatpush1.msra.mxu0 0.0
    %225 = vmatprep.subr.mxu0 0.0
    %226 = vmatpush1.msra.mxu0 0.0
    %227 = vmatprep.subr.mxu0 0.0
    %228 = vmatpush1.msra.mxu0 0.0
    %229 = vmatprep.subr.mxu0 0.0
    %230 = vmatpush1.msra.mxu0 0.0
    %231 = vmatprep.subr.mxu0 0.0
    %232 = vmatpush1.msra.mxu0 0.0
    %233 = vmatprep.subr.mxu0 0.0
    %234 = vmatpush1.msra.mxu0 0.0
    %235 = vmatprep.mubr.f32.mxu0 0.0
    %v236 = vand.u32 %v45, 4294901760
    %v237 = vsub.f32 %v45, %v236
    %v238 = vand.u32 %v237, 4294901760
    %v239 = vsub.f32 %v237, %v238
    %v240 = vand.u32 %v239, 4294901760
    %241 = vmatmul.mubr.f32.gmra.mrb[0].mxu0 %v240
    %v242 = vpop.f32.mrb[0].mxu0
    %v243 = vadd.f32 0.0, %v242
    %v244 = vpop.f32.mrb[0].mxu0
    %v245 = vadd.f32 0.0, %v244
    %246 = vdwg.mxu0
    %v247 = vand.u32 %v108, 4294901760
    %v248 = vsub.f32 %v108, %v247
    %v249 = vand.u32 %v248, 4294901760
    %v250 = vsub.f32 %v248, %v249
    %v251 = vand.u32 %v250, 4294901760
    %252 = vmatprep.subr.mxu0 %v251
    %v253 = vand.u32 %v107, 4294901760
    %v254 = vsub.f32 %v107, %v253
    %v255 = vand.u32 %v254, 4294901760
    %v256 = vsub.f32 %v254, %v255
    %v257 = vand.u32 %v256, 4294901760
    %258 = vmatpush1.msra.mxu0 %v257
    %v259 = vand.u32 %v110, 4294901760
    %v260 = vsub.f32 %v110, %v259
    %v261 = vand.u32 %v260, 4294901760
    %v262 = vsub.f32 %v260, %v261
    %v263 = vand.u32 %v262, 4294901760
    %264 = vmatprep.subr.mxu0 %v263
    %v265 = vand.u32 %v109, 4294901760
    %v266 = vsub.f32 %v109, %v265
    %v267 = vand.u32 %v266, 4294901760
    %v268 = vsub.f32 %v266, %v267
    %v269 = vand.u32 %v268, 4294901760
    %270 = vmatpush1.msra.mxu0 %v269
    %v271 = vand.u32 %v112, 4294901760
    %v272 = vsub.f32 %v112, %v271
    %v273 = vand.u32 %v272, 4294901760
    %v274 = vsub.f32 %v272, %v273
    %v275 = vand.u32 %v274, 4294901760
    %276 = vmatprep.subr.mxu0 %v275
    %v277 = vand.u32 %v111, 4294901760
    %v278 = vsub.f32 %v111, %v277
    %v279 = vand.u32 %v278, 4294901760
    %v280 = vsub.f32 %v278, %v279
    %v281 = vand.u32 %v280, 4294901760
    %282 = vmatpush1.msra.mxu0 %v281
    %v283 = vand.u32 %v114, 4294901760
    %v284 = vsub.f32 %v114, %v283
    %v285 = vand.u32 %v284, 4294901760
    %v286 = vsub.f32 %v284, %v285
    %v287 = vand.u32 %v286, 4294901760
    %288 = vmatprep.subr.mxu0 %v287
    %v289 = vand.u32 %v113, 4294901760
    %v290 = vsub.f32 %v113, %v289
    %v291 = vand.u32 %v290, 4294901760
    %v292 = vsub.f32 %v290, %v291
    %v293 = vand.u32 %v292, 4294901760
    %294 = vmatpush1.msra.mxu0 %v293
    %v295 = vand.u32 %v116, 4294901760
    %v296 = vsub.f32 %v116, %v295
    %v297 = vand.u32 %v296, 4294901760
    %v298 = vsub.f32 %v296, %v297
    %v299 = vand.u32 %v298, 4294901760
    %300 = vmatprep.subr.mxu0 %v299
    %v301 = vand.u32 %v115, 4294901760
    %v302 = vsub.f32 %v115, %v301
    %v303 = vand.u32 %v302, 4294901760
    %v304 = vsub.f32 %v302, %v303
    %v305 = vand.u32 %v304, 4294901760
    %306 = vmatpush1.msra.mxu0 %v305
    %v307 = vand.u32 %v118, 4294901760
    %v308 = vsub.f32 %v118, %v307
    %v309 = vand.u32 %v308, 4294901760
    %v310 = vsub.f32 %v308, %v309
    %v311 = vand.u32 %v310, 4294901760
    %312 = vmatprep.subr.mxu0 %v311
    %v313 = vand.u32 %v117, 4294901760
    %v314 = vsub.f32 %v117, %v313
    %v315 = vand.u32 %v314, 4294901760
    %v316 = vsub.f32 %v314, %v315
    %v317 = vand.u32 %v316, 4294901760
    %318 = vmatpush1.msra.mxu0 %v317
    %v319 = vand.u32 %v120, 4294901760
    %v320 = vsub.f32 %v120, %v319
    %v321 = vand.u32 %v320, 4294901760
    %v322 = vsub.f32 %v320, %v321
    %v323 = vand.u32 %v322, 4294901760
    %324 = vmatprep.subr.mxu0 %v323
    %v325 = vand.u32 %v119, 4294901760
    %v326 = vsub.f32 %v119, %v325
    %v327 = vand.u32 %v326, 4294901760
    %v328 = vsub.f32 %v326, %v327
    %v329 = vand.u32 %v328, 4294901760
    %330 = vmatpush1.msra.mxu0 %v329
    %v331 = vand.u32 %v122, 4294901760
    %v332 = vsub.f32 %v122, %v331
    %v333 = vand.u32 %v332, 4294901760
    %v334 = vsub.f32 %v332, %v333
    %v335 = vand.u32 %v334, 4294901760
    %336 = vmatprep.subr.mxu0 %v335
    %v337 = vand.u32 %v121, 4294901760
    %v338 = vsub.f32 %v121, %v337
    %v339 = vand.u32 %v338, 4294901760
    %v340 = vsub.f32 %v338, %v339
    %v341 = vand.u32 %v340, 4294901760
    %342 = vmatpush1.msra.mxu0 %v341
    %v343 = vand.u32 %v124, 4294901760
    %v344 = vsub.f32 %v124, %v343
    %v345 = vand.u32 %v344, 4294901760
    %v346 = vsub.f32 %v344, %v345
    %v347 = vand.u32 %v346, 4294901760
    %348 = vmatprep.subr.mxu0 %v347
    %v349 = vand.u32 %v123, 4294901760
    %v350 = vsub.f32 %v123, %v349
    %v351 = vand.u32 %v350, 4294901760
    %v352 = vsub.f32 %v350, %v351
    %v353 = vand.u32 %v352, 4294901760
    %354 = vmatpush1.msra.mxu0 %v353
    %v355 = vand.u32 %v126, 4294901760
    %v356 = vsub.f32 %v126, %v355
    %v357 = vand.u32 %v356, 4294901760
    %v358 = vsub.f32 %v356, %v357
    %v359 = vand.u32 %v358, 4294901760
    %360 = vmatprep.subr.mxu0 %v359
    %v361 = vand.u32 %v125, 4294901760
    %v362 = vsub.f32 %v125, %v361
    %v363 = vand.u32 %v362, 4294901760
    %v364 = vsub.f32 %v362, %v363
    %v365 = vand.u32 %v364, 4294901760
    %366 = vmatpush1.msra.mxu0 %v365
    %v367 = vand.u32 %v128, 4294901760
    %v368 = vsub.f32 %v128, %v367
    %v369 = vand.u32 %v368, 4294901760
    %v370 = vsub.f32 %v368, %v369
    %v371 = vand.u32 %v370, 4294901760
    %372 = vmatprep.subr.mxu0 %v371
    %v373 = vand.u32 %v127, 4294901760
    %v374 = vsub.f32 %v127, %v373
    %v375 = vand.u32 %v374, 4294901760
    %v376 = vsub.f32 %v374, %v375
    %v377 = vand.u32 %v376, 4294901760
    %378 = vmatpush1.msra.mxu0 %v377
    %v379 = vand.u32 %v130, 4294901760
    %v380 = vsub.f32 %v130, %v379
    %v381 = vand.u32 %v380, 4294901760
    %v382 = vsub.f32 %v380, %v381
    %v383 = vand.u32 %v382, 4294901760
    %384 = vmatprep.subr.mxu0 %v383
    %v385 = vand.u32 %v129, 4294901760
    %v386 = vsub.f32 %v129, %v385
    %v387 = vand.u32 %v386, 4294901760
    %v388 = vsub.f32 %v386, %v387
    %v389 = vand.u32 %v388, 4294901760
    %390 = vmatpush1.msra.mxu0 %v389
    %v391 = vand.u32 %v132, 4294901760
    %v392 = vsub.f32 %v132, %v391
    %v393 = vand.u32 %v392, 4294901760
    %v394 = vsub.f32 %v392, %v393
    %v395 = vand.u32 %v394, 4294901760
    %396 = vmatprep.subr.mxu0 %v395
    %v397 = vand.u32 %v131, 4294901760
    %v398 = vsub.f32 %v131, %v397
    %v399 = vand.u32 %v398, 4294901760
    %v400 = vsub.f32 %v398, %v399
    %v401 = vand.u32 %v400, 4294901760
    %402 = vmatpush1.msra.mxu0 %v401
    %v403 = vand.u32 %v134, 4294901760
    %v404 = vsub.f32 %v134, %v403
    %v405 = vand.u32 %v404, 4294901760
    %v406 = vsub.f32 %v404, %v405
    %v407 = vand.u32 %v406, 4294901760
    %408 = vmatprep.subr.mxu0 %v407
    %v409 = vand.u32 %v133, 4294901760
    %v410 = vsub.f32 %v133, %v409
    %v411 = vand.u32 %v410, 4294901760
    %v412 = vsub.f32 %v410, %v411
    %v413 = vand.u32 %v412, 4294901760
    %414 = vmatpush1.msra.mxu0 %v413
    %v415 = vand.u32 %v136, 4294901760
    %v416 = vsub.f32 %v136, %v415
    %v417 = vand.u32 %v416, 4294901760
    %v418 = vsub.f32 %v416, %v417
    %v419 = vand.u32 %v418, 4294901760
    %420 = vmatprep.subr.mxu0 %v419
    %v421 = vand.u32 %v135, 4294901760
    %v422 = vsub.f32 %v135, %v421
    %v423 = vand.u32 %v422, 4294901760
    %v424 = vsub.f32 %v422, %v423
    %v425 = vand.u32 %v424, 4294901760
    %426 = vmatpush1.msra.mxu0 %v425
    %v427 = vand.u32 %v138, 4294901760
    %v428 = vsub.f32 %v138, %v427
    %v429 = vand.u32 %v428, 4294901760
    %v430 = vsub.f32 %v428, %v429
    %v431 = vand.u32 %v430, 4294901760
    %432 = vmatprep.subr.mxu0 %v431
    %v433 = vand.u32 %v137, 4294901760
    %v434 = vsub.f32 %v137, %v433
    %v435 = vand.u32 %v434, 4294901760
    %v436 = vsub.f32 %v434, %v435
    %v437 = vand.u32 %v436, 4294901760
    %438 = vmatpush1.msra.mxu0 %v437
    %439 = vmatprep.subr.mxu0 0.0
    %440 = vmatpush1.msra.mxu0 0.0
    %441 = vmatprep.subr.mxu0 0.0
    %442 = vmatpush1.msra.mxu0 0.0
    %443 = vmatprep.subr.mxu0 0.0
    %444 = vmatpush1.msra.mxu0 0.0
    %445 = vmatprep.subr.mxu0 0.0
    %446 = vmatpush1.msra.mxu0 0.0
    %447 = vmatprep.subr.mxu0 0.0
    %448 = vmatpush1.msra.mxu0 0.0
    %449 = vmatprep.subr.mxu0 0.0
    %450 = vmatpush1.msra.mxu0 0.0
    %451 = vmatprep.subr.mxu0 0.0
    %452 = vmatpush1.msra.mxu0 0.0
    %453 = vmatprep.subr.mxu0 0.0
    %454 = vmatpush1.msra.mxu0 0.0
    %455 = vmatprep.subr.mxu0 0.0
    %456 = vmatpush1.msra.mxu0 0.0
    %457 = vmatprep.subr.mxu0 0.0
    %458 = vmatpush1.msra.mxu0 0.0
    %459 = vmatprep.subr.mxu0 0.0
    %460 = vmatpush1.msra.mxu0 0.0
    %461 = vmatprep.subr.mxu0 0.0
    %462 = vmatpush1.msra.mxu0 0.0
    %463 = vmatprep.subr.mxu0 0.0
    %464 = vmatpush1.msra.mxu0 0.0
    %465 = vmatprep.subr.mxu0 0.0
    %466 = vmatpush1.msra.mxu0 0.0
    %467 = vmatprep.subr.mxu0 0.0
    %468 = vmatpush1.msra.mxu0 0.0
    %469 = vmatprep.subr.mxu0 0.0
    %470 = vmatpush1.msra.mxu0 0.0
    %471 = vmatprep.mubr.f32.mxu0 0.0
    %v472 = vand.u32 %v45, 4294901760
    %473 = vmatmul.mubr.f32.gmra.mrb[0].mxu0 %v472
    %v474 = vpop.f32.mrb[0].mxu0
    %v475 = vadd.f32 %v243, %v474
    %v476 = vpop.f32.mrb[0].mxu0
    %v477 = vadd.f32 %v245, %v476
    %478 = vdwg.mxu0
    %v479 = vand.u32 %v108, 4294901760
    %v480 = vsub.f32 %v108, %v479
    %481 = vmatprep.subr.mxu0 %v480
    %v482 = vand.u32 %v107, 4294901760
    %v483 = vsub.f32 %v107, %v482
    %484 = vmatpush1.msra.mxu0 %v483
    %v485 = vand.u32 %v110, 4294901760
    %v486 = vsub.f32 %v110, %v485
    %487 = vmatprep.subr.mxu0 %v486
    %v488 = vand.u32 %v109, 4294901760
    %v489 = vsub.f32 %v109, %v488
    %490 = vmatpush1.msra.mxu0 %v489
    %v491 = vand.u32 %v112, 4294901760
    %v492 = vsub.f32 %v112, %v491
    %493 = vmatprep.subr.mxu0 %v492
    %v494 = vand.u32 %v111, 4294901760
    %v495 = vsub.f32 %v111, %v494
    %496 = vmatpush1.msra.mxu0 %v495
    %v497 = vand.u32 %v114, 4294901760
    %v498 = vsub.f32 %v114, %v497
    %499 = vmatprep.subr.mxu0 %v498
    %v500 = vand.u32 %v113, 4294901760
    %v501 = vsub.f32 %v113, %v500
    %502 = vmatpush1.msra.mxu0 %v501
    %v503 = vand.u32 %v116, 4294901760
    %v504 = vsub.f32 %v116, %v503
    %505 = vmatprep.subr.mxu0 %v504
    %v506 = vand.u32 %v115, 4294901760
    %v507 = vsub.f32 %v115, %v506
    %508 = vmatpush1.msra.mxu0 %v507
    %v509 = vand.u32 %v118, 4294901760
    %v510 = vsub.f32 %v118, %v509
    %511 = vmatprep.subr.mxu0 %v510
    %v512 = vand.u32 %v117, 4294901760
    %v513 = vsub.f32 %v117, %v512
    %514 = vmatpush1.msra.mxu0 %v513
    %v515 = vand.u32 %v120, 4294901760
    %v516 = vsub.f32 %v120, %v515
    %517 = vmatprep.subr.mxu0 %v516
    %v518 = vand.u32 %v119, 4294901760
    %v519 = vsub.f32 %v119, %v518
    %520 = vmatpush1.msra.mxu0 %v519
    %v521 = vand.u32 %v122, 4294901760
    %v522 = vsub.f32 %v122, %v521
    %523 = vmatprep.subr.mxu0 %v522
    %v524 = vand.u32 %v121, 4294901760
    %v525 = vsub.f32 %v121, %v524
    %526 = vmatpush1.msra.mxu0 %v525
    %v527 = vand.u32 %v124, 4294901760
    %v528 = vsub.f32 %v124, %v527
    %529 = vmatprep.subr.mxu0 %v528
    %v530 = vand.u32 %v123, 4294901760
    %v531 = vsub.f32 %v123, %v530
    %532 = vmatpush1.msra.mxu0 %v531
    %v533 = vand.u32 %v126, 4294901760
    %v534 = vsub.f32 %v126, %v533
    %535 = vmatprep.subr.mxu0 %v534
    %v536 = vand.u32 %v125, 4294901760
    %v537 = vsub.f32 %v125, %v536
    %538 = vmatpush1.msra.mxu0 %v537
    %v539 = vand.u32 %v128, 4294901760
    %v540 = vsub.f32 %v128, %v539
    %541 = vmatprep.subr.mxu0 %v540
    %v542 = vand.u32 %v127, 4294901760
    %v543 = vsub.f32 %v127, %v542
    %544 = vmatpush1.msra.mxu0 %v543
    %v545 = vand.u32 %v130, 4294901760
    %v546 = vsub.f32 %v130, %v545
    %547 = vmatprep.subr.mxu0 %v546
    %v548 = vand.u32 %v129, 4294901760
    %v549 = vsub.f32 %v129, %v548
    %550 = vmatpush1.msra.mxu0 %v549
    %v551 = vand.u32 %v132, 4294901760
    %v552 = vsub.f32 %v132, %v551
    %553 = vmatprep.subr.mxu0 %v552
    %v554 = vand.u32 %v131, 4294901760
    %v555 = vsub.f32 %v131, %v554
    %556 = vmatpush1.msra.mxu0 %v555
    %v557 = vand.u32 %v134, 4294901760
    %v558 = vsub.f32 %v134, %v557
    %559 = vmatprep.subr.mxu0 %v558
    %v560 = vand.u32 %v133, 4294901760
    %v561 = vsub.f32 %v133, %v560
    %562 = vmatpush1.msra.mxu0 %v561
    %v563 = vand.u32 %v136, 4294901760
    %v564 = vsub.f32 %v136, %v563
    %565 = vmatprep.subr.mxu0 %v564
    %v566 = vand.u32 %v135, 4294901760
    %v567 = vsub.f32 %v135, %v566
    %568 = vmatpush1.msra.mxu0 %v567
    %v569 = vand.u32 %v138, 4294901760
    %v570 = vsub.f32 %v138, %v569
    %571 = vmatprep.subr.mxu0 %v570
    %v572 = vand.u32 %v137, 4294901760
    %v573 = vsub.f32 %v137, %v572
    %574 = vmatpush1.msra.mxu0 %v573
    %575 = vmatprep.subr.mxu0 0.0
    %576 = vmatpush1.msra.mxu0 0.0
    %577 = vmatprep.subr.mxu0 0.0
    %578 = vmatpush1.msra.mxu0 0.0
    %579 = vmatprep.subr.mxu0 0.0
    %580 = vmatpush1.msra.mxu0 0.0
    %581 = vmatprep.subr.mxu0 0.0
    %582 = vmatpush1.msra.mxu0 0.0
    %583 = vmatprep.subr.mxu0 0.0
    %584 = vmatpush1.msra.mxu0 0.0
    %585 = vmatprep.subr.mxu0 0.0
    %586 = vmatpush1.msra.mxu0 0.0
    %587 = vmatprep.subr.mxu0 0.0
    %588 = vmatpush1.msra.mxu0 0.0
    %589 = vmatprep.subr.mxu0 0.0
    %590 = vmatpush1.msra.mxu0 0.0
    %591 = vmatprep.subr.mxu0 0.0
    %592 = vmatpush1.msra.mxu0 0.0
    %593 = vmatprep.subr.mxu0 0.0
    %594 = vmatpush1.msra.mxu0 0.0
    %595 = vmatprep.subr.mxu0 0.0
    %596 = vmatpush1.msra.mxu0 0.0
    %597 = vmatprep.subr.mxu0 0.0
    %598 = vmatpush1.msra.mxu0 0.0
    %599 = vmatprep.subr.mxu0 0.0
    %600 = vmatpush1.msra.mxu0 0.0
    %601 = vmatprep.subr.mxu0 0.0
    %602 = vmatpush1.msra.mxu0 0.0
    %603 = vmatprep.subr.mxu0 0.0
    %604 = vmatpush1.msra.mxu0 0.0
    %605 = vmatprep.subr.mxu0 0.0
    %606 = vmatpush1.msra.mxu0 0.0
    %607 = vmatprep.mubr.f32.mxu0 0.0
    %v608 = vand.u32 %v45, 4294901760
    %v609 = vsub.f32 %v45, %v608
    %610 = vmatmul.mubr.f32.gmra.mrb[0].mxu0 %v609
    %v611 = vpop.f32.mrb[0].mxu0
    %v612 = vadd.f32 %v475, %v611
    %v613 = vpop.f32.mrb[0].mxu0
    %v614 = vadd.f32 %v477, %v613
    %615 = vdwg.mxu0
    %v616 = vand.u32 %v108, 4294901760
    %617 = vmatprep.subr.mxu0 %v616
    %v618 = vand.u32 %v107, 4294901760
    %619 = vmatpush1.msra.mxu0 %v618
    %v620 = vand.u32 %v110, 4294901760
    %621 = vmatprep.subr.mxu0 %v620
    %v622 = vand.u32 %v109, 4294901760
    %623 = vmatpush1.msra.mxu0 %v622
    %v624 = vand.u32 %v112, 4294901760
    %625 = vmatprep.subr.mxu0 %v624
    %v626 = vand.u32 %v111, 4294901760
    %627 = vmatpush1.msra.mxu0 %v626
    %v628 = vand.u32 %v114, 4294901760
    %629 = vmatprep.subr.mxu0 %v628
    %v630 = vand.u32 %v113, 4294901760
    %631 = vmatpush1.msra.mxu0 %v630
    %v632 = vand.u32 %v116, 4294901760
    %633 = vmatprep.subr.mxu0 %v632
    %v634 = vand.u32 %v115, 4294901760
    %635 = vmatpush1.msra.mxu0 %v634
    %v636 = vand.u32 %v118, 4294901760
    %637 = vmatprep.subr.mxu0 %v636
    %v638 = vand.u32 %v117, 4294901760
    %639 = vmatpush1.msra.mxu0 %v638
    %v640 = vand.u32 %v120, 4294901760
    %641 = vmatprep.subr.mxu0 %v640
    %v642 = vand.u32 %v119, 4294901760
    %643 = vmatpush1.msra.mxu0 %v642
    %v644 = vand.u32 %v122, 4294901760
    %645 = vmatprep.subr.mxu0 %v644
    %v646 = vand.u32 %v121, 4294901760
    %647 = vmatpush1.msra.mxu0 %v646
    %v648 = vand.u32 %v124, 4294901760
    %649 = vmatprep.subr.mxu0 %v648
    %v650 = vand.u32 %v123, 4294901760
    %651 = vmatpush1.msra.mxu0 %v650
    %v652 = vand.u32 %v126, 4294901760
    %653 = vmatprep.subr.mxu0 %v652
    %v654 = vand.u32 %v125, 4294901760
    %655 = vmatpush1.msra.mxu0 %v654
    %v656 = vand.u32 %v128, 4294901760
    %657 = vmatprep.subr.mxu0 %v656
    %v658 = vand.u32 %v127, 4294901760
    %659 = vmatpush1.msra.mxu0 %v658
    %v660 = vand.u32 %v130, 4294901760
    %661 = vmatprep.subr.mxu0 %v660
    %v662 = vand.u32 %v129, 4294901760
    %663 = vmatpush1.msra.mxu0 %v662
    %v664 = vand.u32 %v132, 4294901760
    %665 = vmatprep.subr.mxu0 %v664
    %v666 = vand.u32 %v131, 4294901760
    %667 = vmatpush1.msra.mxu0 %v666
    %v668 = vand.u32 %v134, 4294901760
    %669 = vmatprep.subr.mxu0 %v668
    %v670 = vand.u32 %v133, 4294901760
    %671 = vmatpush1.msra.mxu0 %v670
    %v672 = vand.u32 %v136, 4294901760
    %673 = vmatprep.subr.mxu0 %v672
    %v674 = vand.u32 %v135, 4294901760
    %675 = vmatpush1.msra.mxu0 %v674
    %v676 = vand.u32 %v138, 4294901760
    %677 = vmatprep.subr.mxu0 %v676
    %v678 = vand.u32 %v137, 4294901760
    %679 = vmatpush1.msra.mxu0 %v678
    %680 = vmatprep.subr.mxu0 0.0
    %681 = vmatpush1.msra.mxu0 0.0
    %682 = vmatprep.subr.mxu0 0.0
    %683 = vmatpush1.msra.mxu0 0.0
    %684 = vmatprep.subr.mxu0 0.0
    %685 = vmatpush1.msra.mxu0 0.0
    %686 = vmatprep.subr.mxu0 0.0
    %687 = vmatpush1.msra.mxu0 0.0
    %688 = vmatprep.subr.mxu0 0.0
    %689 = vmatpush1.msra.mxu0 0.0
    %690 = vmatprep.subr.mxu0 0.0
    %691 = vmatpush1.msra.mxu0 0.0
    %692 = vmatprep.subr.mxu0 0.0
    %693 = vmatpush1.msra.mxu0 0.0
    %694 = vmatprep.subr.mxu0 0.0
    %695 = vmatpush1.msra.mxu0 0.0
    %696 = vmatprep.subr.mxu0 0.0
    %697 = vmatpush1.msra.mxu0 0.0
    %698 = vmatprep.subr.mxu0 0.0
    %699 = vmatpush1.msra.mxu0 0.0
    %700 = vmatprep.subr.mxu0 0.0
    %701 = vmatpush1.msra.mxu0 0.0
    %702 = vmatprep.subr.mxu0 0.0
    %703 = vmatpush1.msra.mxu0 0.0
    %704 = vmatprep.subr.mxu0 0.0
    %705 = vmatpush1.msra.mxu0 0.0
    %706 = vmatprep.subr.mxu0 0.0
    %707 = vmatpush1.msra.mxu0 0.0
    %708 = vmatprep.subr.mxu0 0.0
    %709 = vmatpush1.msra.mxu0 0.0
    %710 = vmatprep.subr.mxu0 0.0
    %711 = vmatpush1.msra.mxu0 0.0
    %712 = vmatprep.mubr.f32.mxu0 0.0
    %v713 = vand.u32 %v45, 4294901760
    %v714 = vsub.f32 %v45, %v713
    %v715 = vand.u32 %v714, 4294901760
    %716 = vmatmul.mubr.f32.gmra.mrb[0].mxu0 %v715
    %v717 = vpop.f32.mrb[0].mxu0
    %v718 = vadd.f32 %v612, %v717
    %v719 = vpop.f32.mrb[0].mxu0
    %v720 = vadd.f32 %v614, %v719
    %721 = vdwg.mxu0
    %v722 = vand.u32 %v108, 4294901760
    %v723 = vsub.f32 %v108, %v722
    %v724 = vand.u32 %v723, 4294901760
    %725 = vmatprep.subr.mxu0 %v724
    %v726 = vand.u32 %v107, 4294901760
    %v727 = vsub.f32 %v107, %v726
    %v728 = vand.u32 %v727, 4294901760
    %729 = vmatpush1.msra.mxu0 %v728
    %v730 = vand.u32 %v110, 4294901760
    %v731 = vsub.f32 %v110, %v730
    %v732 = vand.u32 %v731, 4294901760
    %733 = vmatprep.subr.mxu0 %v732
    %v734 = vand.u32 %v109, 4294901760
    %v735 = vsub.f32 %v109, %v734
    %v736 = vand.u32 %v735, 4294901760
    %737 = vmatpush1.msra.mxu0 %v736
    %v738 = vand.u32 %v112, 4294901760
    %v739 = vsub.f32 %v112, %v738
    %v740 = vand.u32 %v739, 4294901760
    %741 = vmatprep.subr.mxu0 %v740
    %v742 = vand.u32 %v111, 4294901760
    %v743 = vsub.f32 %v111, %v742
    %v744 = vand.u32 %v743, 4294901760
    %745 = vmatpush1.msra.mxu0 %v744
    %v746 = vand.u32 %v114, 4294901760
    %v747 = vsub.f32 %v114, %v746
    %v748 = vand.u32 %v747, 4294901760
    %749 = vmatprep.subr.mxu0 %v748
    %v750 = vand.u32 %v113, 4294901760
    %v751 = vsub.f32 %v113, %v750
    %v752 = vand.u32 %v751, 4294901760
    %753 = vmatpush1.msra.mxu0 %v752
    %v754 = vand.u32 %v116, 4294901760
    %v755 = vsub.f32 %v116, %v754
    %v756 = vand.u32 %v755, 4294901760
    %757 = vmatprep.subr.mxu0 %v756
    %v758 = vand.u32 %v115, 4294901760
    %v759 = vsub.f32 %v115, %v758
    %v760 = vand.u32 %v759, 4294901760
    %761 = vmatpush1.msra.mxu0 %v760
    %v762 = vand.u32 %v118, 4294901760
    %v763 = vsub.f32 %v118, %v762
    %v764 = vand.u32 %v763, 4294901760
    %765 = vmatprep.subr.mxu0 %v764
    %v766 = vand.u32 %v117, 4294901760
    %v767 = vsub.f32 %v117, %v766
    %v768 = vand.u32 %v767, 4294901760
    %769 = vmatpush1.msra.mxu0 %v768
    %v770 = vand.u32 %v120, 4294901760
    %v771 = vsub.f32 %v120, %v770
    %v772 = vand.u32 %v771, 4294901760
    %773 = vmatprep.subr.mxu0 %v772
    %v774 = vand.u32 %v119, 4294901760
    %v775 = vsub.f32 %v119, %v774
    %v776 = vand.u32 %v775, 4294901760
    %777 = vmatpush1.msra.mxu0 %v776
    %v778 = vand.u32 %v122, 4294901760
    %v779 = vsub.f32 %v122, %v778
    %v780 = vand.u32 %v779, 4294901760
    %781 = vmatprep.subr.mxu0 %v780
    %v782 = vand.u32 %v121, 4294901760
    %v783 = vsub.f32 %v121, %v782
    %v784 = vand.u32 %v783, 4294901760
    %785 = vmatpush1.msra.mxu0 %v784
    %v786 = vand.u32 %v124, 4294901760
    %v787 = vsub.f32 %v124, %v786
    %v788 = vand.u32 %v787, 4294901760
    %789 = vmatprep.subr.mxu0 %v788
    %v790 = vand.u32 %v123, 4294901760
    %v791 = vsub.f32 %v123, %v790
    %v792 = vand.u32 %v791, 4294901760
    %793 = vmatpush1.msra.mxu0 %v792
    %v794 = vand.u32 %v126, 4294901760
    %v795 = vsub.f32 %v126, %v794
    %v796 = vand.u32 %v795, 4294901760
    %797 = vmatprep.subr.mxu0 %v796
    %v798 = vand.u32 %v125, 4294901760
    %v799 = vsub.f32 %v125, %v798
    %v800 = vand.u32 %v799, 4294901760
    %801 = vmatpush1.msra.mxu0 %v800
    %v802 = vand.u32 %v128, 4294901760
    %v803 = vsub.f32 %v128, %v802
    %v804 = vand.u32 %v803, 4294901760
    %805 = vmatprep.subr.mxu0 %v804
    %v806 = vand.u32 %v127, 4294901760
    %v807 = vsub.f32 %v127, %v806
    %v808 = vand.u32 %v807, 4294901760
    %809 = vmatpush1.msra.mxu0 %v808
    %v810 = vand.u32 %v130, 4294901760
    %v811 = vsub.f32 %v130, %v810
    %v812 = vand.u32 %v811, 4294901760
    %813 = vmatprep.subr.mxu0 %v812
    %v814 = vand.u32 %v129, 4294901760
    %v815 = vsub.f32 %v129, %v814
    %v816 = vand.u32 %v815, 4294901760
    %817 = vmatpush1.msra.mxu0 %v816
    %v818 = vand.u32 %v132, 4294901760
    %v819 = vsub.f32 %v132, %v818
    %v820 = vand.u32 %v819, 4294901760
    %821 = vmatprep.subr.mxu0 %v820
    %v822 = vand.u32 %v131, 4294901760
    %v823 = vsub.f32 %v131, %v822
    %v824 = vand.u32 %v823, 4294901760
    %825 = vmatpush1.msra.mxu0 %v824
    %v826 = vand.u32 %v134, 4294901760
    %v827 = vsub.f32 %v134, %v826
    %v828 = vand.u32 %v827, 4294901760
    %829 = vmatprep.subr.mxu0 %v828
    %v830 = vand.u32 %v133, 4294901760
    %v831 = vsub.f32 %v133, %v830
    %v832 = vand.u32 %v831, 4294901760
    %833 = vmatpush1.msra.mxu0 %v832
    %v834 = vand.u32 %v136, 4294901760
    %v835 = vsub.f32 %v136, %v834
    %v836 = vand.u32 %v835, 4294901760
    %837 = vmatprep.subr.mxu0 %v836
    %v838 = vand.u32 %v135, 4294901760
    %v839 = vsub.f32 %v135, %v838
    %v840 = vand.u32 %v839, 4294901760
    %841 = vmatpush1.msra.mxu0 %v840
    %v842 = vand.u32 %v138, 4294901760
    %v843 = vsub.f32 %v138, %v842
    %v844 = vand.u32 %v843, 4294901760
    %845 = vmatprep.subr.mxu0 %v844
    %v846 = vand.u32 %v137, 4294901760
    %v847 = vsub.f32 %v137, %v846
    %v848 = vand.u32 %v847, 4294901760
    %849 = vmatpush1.msra.mxu0 %v848
    %850 = vmatprep.subr.mxu0 0.0
    %851 = vmatpush1.msra.mxu0 0.0
    %852 = vmatprep.subr.mxu0 0.0
    %853 = vmatpush1.msra.mxu0 0.0
    %854 = vmatprep.subr.mxu0 0.0
    %855 = vmatpush1.msra.mxu0 0.0
    %856 = vmatprep.subr.mxu0 0.0
    %857 = vmatpush1.msra.mxu0 0.0
    %858 = vmatprep.subr.mxu0 0.0
    %859 = vmatpush1.msra.mxu0 0.0
    %860 = vmatprep.subr.mxu0 0.0
    %861 = vmatpush1.msra.mxu0 0.0
    %862 = vmatprep.subr.mxu0 0.0
    %863 = vmatpush1.msra.mxu0 0.0
    %864 = vmatprep.subr.mxu0 0.0
    %865 = vmatpush1.msra.mxu0 0.0
    %866 = vmatprep.subr.mxu0 0.0
    %867 = vmatpush1.msra.mxu0 0.0
    %868 = vmatprep.subr.mxu0 0.0
    %869 = vmatpush1.msra.mxu0 0.0
    %870 = vmatprep.subr.mxu0 0.0
    %871 = vmatpush1.msra.mxu0 0.0
    %872 = vmatprep.subr.mxu0 0.0
    %873 = vmatpush1.msra.mxu0 0.0
    %874 = vmatprep.subr.mxu0 0.0
    %875 = vmatpush1.msra.mxu0 0.0
    %876 = vmatprep.subr.mxu0 0.0
    %877 = vmatpush1.msra.mxu0 0.0
    %878 = vmatprep.subr.mxu0 0.0
    %879 = vmatpush1.msra.mxu0 0.0
    %880 = vmatprep.subr.mxu0 0.0
    %881 = vmatpush1.msra.mxu0 0.0
    %882 = vmatprep.mubr.f32.mxu0 0.0
    %v883 = vand.u32 %v45, 4294901760
    %884 = vmatmul.mubr.f32.gmra.mrb[0].mxu0 %v883
    %v885 = vpop.f32.mrb[0].mxu0
    %v886 = vadd.f32 %v718, %v885
    %v887 = vpop.f32.mrb[0].mxu0
    %v888 = vadd.f32 %v720, %v887
    %889 = vdwg.mxu0
    %v890 = vand.u32 %v108, 4294901760
    %891 = vmatprep.subr.mxu0 %v890
    %v892 = vand.u32 %v107, 4294901760
    %893 = vmatpush1.msra.mxu0 %v892
    %v894 = vand.u32 %v110, 4294901760
    %895 = vmatprep.subr.mxu0 %v894
    %v896 = vand.u32 %v109, 4294901760
    %897 = vmatpush1.msra.mxu0 %v896
    %v898 = vand.u32 %v112, 4294901760
    %899 = vmatprep.subr.mxu0 %v898
    %v900 = vand.u32 %v111, 4294901760
    %901 = vmatpush1.msra.mxu0 %v900
    %v902 = vand.u32 %v114, 4294901760
    %903 = vmatprep.subr.mxu0 %v902
    %v904 = vand.u32 %v113, 4294901760
    %905 = vmatpush1.msra.mxu0 %v904
    %v906 = vand.u32 %v116, 4294901760
    %907 = vmatprep.subr.mxu0 %v906
    %v908 = vand.u32 %v115, 4294901760
    %909 = vmatpush1.msra.mxu0 %v908
    %v910 = vand.u32 %v118, 4294901760
    %911 = vmatprep.subr.mxu0 %v910
    %v912 = vand.u32 %v117, 4294901760
    %913 = vmatpush1.msra.mxu0 %v912
    %v914 = vand.u32 %v120, 4294901760
    %915 = vmatprep.subr.mxu0 %v914
    %v916 = vand.u32 %v119, 4294901760
    %917 = vmatpush1.msra.mxu0 %v916
    %v918 = vand.u32 %v122, 4294901760
    %919 = vmatprep.subr.mxu0 %v918
    %v920 = vand.u32 %v121, 4294901760
    %921 = vmatpush1.msra.mxu0 %v920
    %v922 = vand.u32 %v124, 4294901760
    %923 = vmatprep.subr.mxu0 %v922
    %v924 = vand.u32 %v123, 4294901760
    %925 = vmatpush1.msra.mxu0 %v924
    %v926 = vand.u32 %v126, 4294901760
    %927 = vmatprep.subr.mxu0 %v926
    %v928 = vand.u32 %v125, 4294901760
    %929 = vmatpush1.msra.mxu0 %v928
    %v930 = vand.u32 %v128, 4294901760
    %931 = vmatprep.subr.mxu0 %v930
    %v932 = vand.u32 %v127, 4294901760
    %933 = vmatpush1.msra.mxu0 %v932
    %v934 = vand.u32 %v130, 4294901760
    %935 = vmatprep.subr.mxu0 %v934
    %v936 = vand.u32 %v129, 4294901760
    %937 = vmatpush1.msra.mxu0 %v936
    %v938 = vand.u32 %v132, 4294901760
    %939 = vmatprep.subr.mxu0 %v938
    %v940 = vand.u32 %v131, 4294901760
    %941 = vmatpush1.msra.mxu0 %v940
    %v942 = vand.u32 %v134, 4294901760
    %943 = vmatprep.subr.mxu0 %v942
    %v944 = vand.u32 %v133, 4294901760
    %945 = vmatpush1.msra.mxu0 %v944
    %v946 = vand.u32 %v136, 4294901760
    %947 = vmatprep.subr.mxu0 %v946
    %v948 = vand.u32 %v135, 4294901760
    %949 = vmatpush1.msra.mxu0 %v948
    %v950 = vand.u32 %v138, 4294901760
    %951 = vmatprep.subr.mxu0 %v950
    %v952 = vand.u32 %v137, 4294901760
    %953 = vmatpush1.msra.mxu0 %v952
    %954 = vmatprep.subr.mxu0 0.0
    %955 = vmatpush1.msra.mxu0 0.0
    %956 = vmatprep.subr.mxu0 0.0
    %957 = vmatpush1.msra.mxu0 0.0
    %958 = vmatprep.subr.mxu0 0.0
    %959 = vmatpush1.msra.mxu0 0.0
    %960 = vmatprep.subr.mxu0 0.0
    %961 = vmatpush1.msra.mxu0 0.0
    %962 = vmatprep.subr.mxu0 0.0
    %963 = vmatpush1.msra.mxu0 0.0
    %964 = vmatprep.subr.mxu0 0.0
    %965 = vmatpush1.msra.mxu0 0.0
    %966 = vmatprep.subr.mxu0 0.0
    %967 = vmatpush1.msra.mxu0 0.0
    %968 = vmatprep.subr.mxu0 0.0
    %969 = vmatpush1.msra.mxu0 0.0
    %970 = vmatprep.subr.mxu0 0.0
    %971 = vmatpush1.msra.mxu0 0.0
    %972 = vmatprep.subr.mxu0 0.0
    %973 = vmatpush1.msra.mxu0 0.0
    %974 = vmatprep.subr.mxu0 0.0
    %975 = vmatpush1.msra.mxu0 0.0
    %976 = vmatprep.subr.mxu0 0.0
    %977 = vmatpush1.msra.mxu0 0.0
    %978 = vmatprep.subr.mxu0 0.0
    %979 = vmatpush1.msra.mxu0 0.0
    %980 = vmatprep.subr.mxu0 0.0
    %981 = vmatpush1.msra.mxu0 0.0
    %982 = vmatprep.subr.mxu0 0.0
    %983 = vmatpush1.msra.mxu0 0.0
    %984 = vmatprep.subr.mxu0 0.0
    %985 = vmatpush1.msra.mxu0 0.0
    %986 = vmatprep.mubr.f32.mxu0 0.0
    %v987 = vand.u32 %v45, 4294901760
    %988 = vmatmul.mubr.f32.gmra.mrb[0].mxu0 %v987
    %v989 = vpop.f32.mrb[0].mxu0
    %v990 = vadd.f32 %v886, %v989
    %v991 = vpop.f32.mrb[0].mxu0
    %v992 = vadd.f32 %v888, %v991
    %993 = vdwg.mxu0
    %v994 = vand.u32 %v76, 4294901760
    %995 = vmatprep.subr.mxu0 %v994
    %v996 = vand.u32 %v75, 4294901760
    %997 = vmatpush1.msra.mxu0 %v996
    %v998 = vand.u32 %v78, 4294901760
    %999 = vmatprep.subr.mxu0 %v998
    %v1000 = vand.u32 %v77, 4294901760
    %1001 = vmatpush1.msra.mxu0 %v1000
    %v1002 = vand.u32 %v80, 4294901760
    %1003 = vmatprep.subr.mxu0 %v1002
    %v1004 = vand.u32 %v79, 4294901760
    %1005 = vmatpush1.msra.mxu0 %v1004
    %v1006 = vand.u32 %v82, 4294901760
    %1007 = vmatprep.subr.mxu0 %v1006
    %v1008 = vand.u32 %v81, 4294901760
    %1009 = vmatpush1.msra.mxu0 %v1008
    %v1010 = vand.u32 %v84, 4294901760
    %1011 = vmatprep.subr.mxu0 %v1010
    %v1012 = vand.u32 %v83, 4294901760
    %1013 = vmatpush1.msra.mxu0 %v1012
    %v1014 = vand.u32 %v86, 4294901760
    %1015 = vmatprep.subr.mxu0 %v1014
    %v1016 = vand.u32 %v85, 4294901760
    %1017 = vmatpush1.msra.mxu0 %v1016
    %v1018 = vand.u32 %v88, 4294901760
    %1019 = vmatprep.subr.mxu0 %v1018
    %v1020 = vand.u32 %v87, 4294901760
    %1021 = vmatpush1.msra.mxu0 %v1020
    %v1022 = vand.u32 %v90, 4294901760
    %1023 = vmatprep.subr.mxu0 %v1022
    %v1024 = vand.u32 %v89, 4294901760
    %1025 = vmatpush1.msra.mxu0 %v1024
    %v1026 = vand.u32 %v92, 4294901760
    %1027 = vmatprep.subr.mxu0 %v1026
    %v1028 = vand.u32 %v91, 4294901760
    %1029 = vmatpush1.msra.mxu0 %v1028
    %v1030 = vand.u32 %v94, 4294901760
    %1031 = vmatprep.subr.mxu0 %v1030
    %v1032 = vand.u32 %v93, 4294901760
    %1033 = vmatpush1.msra.mxu0 %v1032
    %v1034 = vand.u32 %v96, 4294901760
    %1035 = vmatprep.subr.mxu0 %v1034
    %v1036 = vand.u32 %v95, 4294901760
    %1037 = vmatpush1.msra.mxu0 %v1036
    %v1038 = vand.u32 %v98, 4294901760
    %1039 = vmatprep.subr.mxu0 %v1038
    %v1040 = vand.u32 %v97, 4294901760
    %1041 = vmatpush1.msra.mxu0 %v1040
    %v1042 = vand.u32 %v100, 4294901760
    %1043 = vmatprep.subr.mxu0 %v1042
    %v1044 = vand.u32 %v99, 4294901760
    %1045 = vmatpush1.msra.mxu0 %v1044
    %v1046 = vand.u32 %v102, 4294901760
    %1047 = vmatprep.subr.mxu0 %v1046
    %v1048 = vand.u32 %v101, 4294901760
    %1049 = vmatpush1.msra.mxu0 %v1048
    %v1050 = vand.u32 %v104, 4294901760
    %1051 = vmatprep.subr.mxu0 %v1050
    %v1052 = vand.u32 %v103, 4294901760
    %1053 = vmatpush1.msra.mxu0 %v1052
    %v1054 = vand.u32 %v106, 4294901760
    %1055 = vmatprep.subr.mxu0 %v1054
    %v1056 = vand.u32 %v105, 4294901760
    %1057 = vmatpush1.msra.mxu0 %v1056
    %1058 = vmatprep.subr.mxu0 0.0
    %1059 = vmatpush1.msra.mxu0 0.0
    %1060 = vmatprep.subr.mxu0 0.0
    %1061 = vmatpush1.msra.mxu0 0.0
    %1062 = vmatprep.subr.mxu0 0.0
    %1063 = vmatpush1.msra.mxu0 0.0
    %1064 = vmatprep.subr.mxu0 0.0
    %1065 = vmatpush1.msra.mxu0 0.0
    %1066 = vmatprep.subr.mxu0 0.0
    %1067 = vmatpush1.msra.mxu0 0.0
    %1068 = vmatprep.subr.mxu0 0.0
    %1069 = vmatpush1.msra.mxu0 0.0
    %1070 = vmatprep.subr.mxu0 0.0
    %1071 = vmatpush1.msra.mxu0 0.0
    %1072 = vmatprep.subr.mxu0 0.0
    %1073 = vmatpush1.msra.mxu0 0.0
    %1074 = vmatprep.subr.mxu0 0.0
    %1075 = vmatpush1.msra.mxu0 0.0
    %1076 = vmatprep.subr.mxu0 0.0
    %1077 = vmatpush1.msra.mxu0 0.0
    %1078 = vmatprep.subr.mxu0 0.0
    %1079 = vmatpush1.msra.mxu0 0.0
    %1080 = vmatprep.subr.mxu0 0.0
    %1081 = vmatpush1.msra.mxu0 0.0
    %1082 = vmatprep.subr.mxu0 0.0
    %1083 = vmatpush1.msra.mxu0 0.0
    %1084 = vmatprep.subr.mxu0 0.0
    %1085 = vmatpush1.msra.mxu0 0.0
    %1086 = vmatprep.subr.mxu0 0.0
    %1087 = vmatpush1.msra.mxu0 0.0
    %1088 = vmatprep.subr.mxu0 0.0
    %1089 = vmatpush1.msra.mxu0 0.0
    %1090 = vmatprep.mubr.f32.mxu0 0.0
    %v1091 = vand.u32 %v74, 4294901760
    %v1092 = vsub.f32 %v74, %v1091
    %v1093 = vand.u32 %v1092, 4294901760
    %v1094 = vsub.f32 %v1092, %v1093
    %v1095 = vand.u32 %v1094, 4294901760
    %1096 = vmatmul.mubr.f32.gmra.mrb[0].mxu0 %v1095
    %v1097 = vpop.f32.mrb[0].mxu0
    %v1098 = vadd.f32 %v990, %v1097
    %v1099 = vpop.f32.mrb[0].mxu0
    %v1100 = vadd.f32 %v992, %v1099
    %1101 = vdwg.mxu0
    %v1102 = vand.u32 %v76, 4294901760
    %v1103 = vsub.f32 %v76, %v1102
    %v1104 = vand.u32 %v1103, 4294901760
    %v1105 = vsub.f32 %v1103, %v1104
    %v1106 = vand.u32 %v1105, 4294901760
    %1107 = vmatprep.subr.mxu0 %v1106
    %v1108 = vand.u32 %v75, 4294901760
    %v1109 = vsub.f32 %v75, %v1108
    %v1110 = vand.u32 %v1109, 4294901760
    %v1111 = vsub.f32 %v1109, %v1110
    %v1112 = vand.u32 %v1111, 4294901760
    %1113 = vmatpush1.msra.mxu0 %v1112
    %v1114 = vand.u32 %v78, 4294901760
    %v1115 = vsub.f32 %v78, %v1114
    %v1116 = vand.u32 %v1115, 4294901760
    %v1117 = vsub.f32 %v1115, %v1116
    %v1118 = vand.u32 %v1117, 4294901760
    %1119 = vmatprep.subr.mxu0 %v1118
    %v1120 = vand.u32 %v77, 4294901760
    %v1121 = vsub.f32 %v77, %v1120
    %v1122 = vand.u32 %v1121, 4294901760
    %v1123 = vsub.f32 %v1121, %v1122
    %v1124 = vand.u32 %v1123, 4294901760
    %1125 = vmatpush1.msra.mxu0 %v1124
    %v1126 = vand.u32 %v80, 4294901760
    %v1127 = vsub.f32 %v80, %v1126
    %v1128 = vand.u32 %v1127, 4294901760
    %v1129 = vsub.f32 %v1127, %v1128
    %v1130 = vand.u32 %v1129, 4294901760
    %1131 = vmatprep.subr.mxu0 %v1130
    %v1132 = vand.u32 %v79, 4294901760
    %v1133 = vsub.f32 %v79, %v1132
    %v1134 = vand.u32 %v1133, 4294901760
    %v1135 = vsub.f32 %v1133, %v1134
    %v1136 = vand.u32 %v1135, 4294901760
    %1137 = vmatpush1.msra.mxu0 %v1136
    %v1138 = vand.u32 %v82, 4294901760
    %v1139 = vsub.f32 %v82, %v1138
    %v1140 = vand.u32 %v1139, 4294901760
    %v1141 = vsub.f32 %v1139, %v1140
    %v1142 = vand.u32 %v1141, 4294901760
    %1143 = vmatprep.subr.mxu0 %v1142
    %v1144 = vand.u32 %v81, 4294901760
    %v1145 = vsub.f32 %v81, %v1144
    %v1146 = vand.u32 %v1145, 4294901760
    %v1147 = vsub.f32 %v1145, %v1146
    %v1148 = vand.u32 %v1147, 4294901760
    %1149 = vmatpush1.msra.mxu0 %v1148
    %v1150 = vand.u32 %v84, 4294901760
    %v1151 = vsub.f32 %v84, %v1150
    %v1152 = vand.u32 %v1151, 4294901760
    %v1153 = vsub.f32 %v1151, %v1152
    %v1154 = vand.u32 %v1153, 4294901760
    %1155 = vmatprep.subr.mxu0 %v1154
    %v1156 = vand.u32 %v83, 4294901760
    %v1157 = vsub.f32 %v83, %v1156
    %v1158 = vand.u32 %v1157, 4294901760
    %v1159 = vsub.f32 %v1157, %v1158
    %v1160 = vand.u32 %v1159, 4294901760
    %1161 = vmatpush1.msra.mxu0 %v1160
    %v1162 = vand.u32 %v86, 4294901760
    %v1163 = vsub.f32 %v86, %v1162
    %v1164 = vand.u32 %v1163, 4294901760
    %v1165 = vsub.f32 %v1163, %v1164
    %v1166 = vand.u32 %v1165, 4294901760
    %1167 = vmatprep.subr.mxu0 %v1166
    %v1168 = vand.u32 %v85, 4294901760
    %v1169 = vsub.f32 %v85, %v1168
    %v1170 = vand.u32 %v1169, 4294901760
    %v1171 = vsub.f32 %v1169, %v1170
    %v1172 = vand.u32 %v1171, 4294901760
    %1173 = vmatpush1.msra.mxu0 %v1172
    %v1174 = vand.u32 %v88, 4294901760
    %v1175 = vsub.f32 %v88, %v1174
    %v1176 = vand.u32 %v1175, 4294901760
    %v1177 = vsub.f32 %v1175, %v1176
    %v1178 = vand.u32 %v1177, 4294901760
    %1179 = vmatprep.subr.mxu0 %v1178
    %v1180 = vand.u32 %v87, 4294901760
    %v1181 = vsub.f32 %v87, %v1180
    %v1182 = vand.u32 %v1181, 4294901760
    %v1183 = vsub.f32 %v1181, %v1182
    %v1184 = vand.u32 %v1183, 4294901760
    %1185 = vmatpush1.msra.mxu0 %v1184
    %v1186 = vand.u32 %v90, 4294901760
    %v1187 = vsub.f32 %v90, %v1186
    %v1188 = vand.u32 %v1187, 4294901760
    %v1189 = vsub.f32 %v1187, %v1188
    %v1190 = vand.u32 %v1189, 4294901760
    %1191 = vmatprep.subr.mxu0 %v1190
    %v1192 = vand.u32 %v89, 4294901760
    %v1193 = vsub.f32 %v89, %v1192
    %v1194 = vand.u32 %v1193, 4294901760
    %v1195 = vsub.f32 %v1193, %v1194
    %v1196 = vand.u32 %v1195, 4294901760
    %1197 = vmatpush1.msra.mxu0 %v1196
    %v1198 = vand.u32 %v92, 4294901760
    %v1199 = vsub.f32 %v92, %v1198
    %v1200 = vand.u32 %v1199, 4294901760
    %v1201 = vsub.f32 %v1199, %v1200
    %v1202 = vand.u32 %v1201, 4294901760
    %1203 = vmatprep.subr.mxu0 %v1202
    %v1204 = vand.u32 %v91, 4294901760
    %v1205 = vsub.f32 %v91, %v1204
    %v1206 = vand.u32 %v1205, 4294901760
    %v1207 = vsub.f32 %v1205, %v1206
    %v1208 = vand.u32 %v1207, 4294901760
    %1209 = vmatpush1.msra.mxu0 %v1208
    %v1210 = vand.u32 %v94, 4294901760
    %v1211 = vsub.f32 %v94, %v1210
    %v1212 = vand.u32 %v1211, 4294901760
    %v1213 = vsub.f32 %v1211, %v1212
    %v1214 = vand.u32 %v1213, 4294901760
    %1215 = vmatprep.subr.mxu0 %v1214
    %v1216 = vand.u32 %v93, 4294901760
    %v1217 = vsub.f32 %v93, %v1216
    %v1218 = vand.u32 %v1217, 4294901760
    %v1219 = vsub.f32 %v1217, %v1218
    %v1220 = vand.u32 %v1219, 4294901760
    %1221 = vmatpush1.msra.mxu0 %v1220
    %v1222 = vand.u32 %v96, 4294901760
    %v1223 = vsub.f32 %v96, %v1222
    %v1224 = vand.u32 %v1223, 4294901760
    %v1225 = vsub.f32 %v1223, %v1224
    %v1226 = vand.u32 %v1225, 4294901760
    %1227 = vmatprep.subr.mxu0 %v1226
    %v1228 = vand.u32 %v95, 4294901760
    %v1229 = vsub.f32 %v95, %v1228
    %v1230 = vand.u32 %v1229, 4294901760
    %v1231 = vsub.f32 %v1229, %v1230
    %v1232 = vand.u32 %v1231, 4294901760
    %1233 = vmatpush1.msra.mxu0 %v1232
    %v1234 = vand.u32 %v98, 4294901760
    %v1235 = vsub.f32 %v98, %v1234
    %v1236 = vand.u32 %v1235, 4294901760
    %v1237 = vsub.f32 %v1235, %v1236
    %v1238 = vand.u32 %v1237, 4294901760
    %1239 = vmatprep.subr.mxu0 %v1238
    %v1240 = vand.u32 %v97, 4294901760
    %v1241 = vsub.f32 %v97, %v1240
    %v1242 = vand.u32 %v1241, 4294901760
    %v1243 = vsub.f32 %v1241, %v1242
    %v1244 = vand.u32 %v1243, 4294901760
    %1245 = vmatpush1.msra.mxu0 %v1244
    %v1246 = vand.u32 %v100, 4294901760
    %v1247 = vsub.f32 %v100, %v1246
    %v1248 = vand.u32 %v1247, 4294901760
    %v1249 = vsub.f32 %v1247, %v1248
    %v1250 = vand.u32 %v1249, 4294901760
    %1251 = vmatprep.subr.mxu0 %v1250
    %v1252 = vand.u32 %v99, 4294901760
    %v1253 = vsub.f32 %v99, %v1252
    %v1254 = vand.u32 %v1253, 4294901760
    %v1255 = vsub.f32 %v1253, %v1254
    %v1256 = vand.u32 %v1255, 4294901760
    %1257 = vmatpush1.msra.mxu0 %v1256
    %v1258 = vand.u32 %v102, 4294901760
    %v1259 = vsub.f32 %v102, %v1258
    %v1260 = vand.u32 %v1259, 4294901760
    %v1261 = vsub.f32 %v1259, %v1260
    %v1262 = vand.u32 %v1261, 4294901760
    %1263 = vmatprep.subr.mxu0 %v1262
    %v1264 = vand.u32 %v101, 4294901760
    %v1265 = vsub.f32 %v101, %v1264
    %v1266 = vand.u32 %v1265, 4294901760
    %v1267 = vsub.f32 %v1265, %v1266
    %v1268 = vand.u32 %v1267, 4294901760
    %1269 = vmatpush1.msra.mxu0 %v1268
    %v1270 = vand.u32 %v104, 4294901760
    %v1271 = vsub.f32 %v104, %v1270
    %v1272 = vand.u32 %v1271, 4294901760
    %v1273 = vsub.f32 %v1271, %v1272
    %v1274 = vand.u32 %v1273, 4294901760
    %1275 = vmatprep.subr.mxu0 %v1274
    %v1276 = vand.u32 %v103, 4294901760
    %v1277 = vsub.f32 %v103, %v1276
    %v1278 = vand.u32 %v1277, 4294901760
    %v1279 = vsub.f32 %v1277, %v1278
    %v1280 = vand.u32 %v1279, 4294901760
    %1281 = vmatpush1.msra.mxu0 %v1280
    %v1282 = vand.u32 %v106, 4294901760
    %v1283 = vsub.f32 %v106, %v1282
    %v1284 = vand.u32 %v1283, 4294901760
    %v1285 = vsub.f32 %v1283, %v1284
    %v1286 = vand.u32 %v1285, 4294901760
    %1287 = vmatprep.subr.mxu0 %v1286
    %v1288 = vand.u32 %v105, 4294901760
    %v1289 = vsub.f32 %v105, %v1288
    %v1290 = vand.u32 %v1289, 4294901760
    %v1291 = vsub.f32 %v1289, %v1290
    %v1292 = vand.u32 %v1291, 4294901760
    %1293 = vmatpush1.msra.mxu0 %v1292
    %1294 = vmatprep.subr.mxu0 0.0
    %1295 = vmatpush1.msra.mxu0 0.0
    %1296 = vmatprep.subr.mxu0 0.0
    %1297 = vmatpush1.msra.mxu0 0.0
    %1298 = vmatprep.subr.mxu0 0.0
    %1299 = vmatpush1.msra.mxu0 0.0
    %1300 = vmatprep.subr.mxu0 0.0
    %1301 = vmatpush1.msra.mxu0 0.0
    %1302 = vmatprep.subr.mxu0 0.0
    %1303 = vmatpush1.msra.mxu0 0.0
    %1304 = vmatprep.subr.mxu0 0.0
    %1305 = vmatpush1.msra.mxu0 0.0
    %1306 = vmatprep.subr.mxu0 0.0
    %1307 = vmatpush1.msra.mxu0 0.0
    %1308 = vmatprep.subr.mxu0 0.0
    %1309 = vmatpush1.msra.mxu0 0.0
    %1310 = vmatprep.subr.mxu0 0.0
    %1311 = vmatpush1.msra.mxu0 0.0
    %1312 = vmatprep.subr.mxu0 0.0
    %1313 = vmatpush1.msra.mxu0 0.0
    %1314 = vmatprep.subr.mxu0 0.0
    %1315 = vmatpush1.msra.mxu0 0.0
    %1316 = vmatprep.subr.mxu0 0.0
    %1317 = vmatpush1.msra.mxu0 0.0
    %1318 = vmatprep.subr.mxu0 0.0
    %1319 = vmatpush1.msra.mxu0 0.0
    %1320 = vmatprep.subr.mxu0 0.0
    %1321 = vmatpush1.msra.mxu0 0.0
    %1322 = vmatprep.subr.mxu0 0.0
    %1323 = vmatpush1.msra.mxu0 0.0
    %1324 = vmatprep.subr.mxu0 0.0
    %1325 = vmatpush1.msra.mxu0 0.0
    %1326 = vmatprep.mubr.f32.mxu0 0.0
    %v1327 = vand.u32 %v74, 4294901760
    %1328 = vmatmul.mubr.f32.gmra.mrb[0].mxu0 %v1327
    %v1329 = vpop.f32.mrb[0].mxu0
    %v1330 = vadd.f32 %v1098, %v1329
    %v1331 = vpop.f32.mrb[0].mxu0
    %v1332 = vadd.f32 %v1100, %v1331
    %1333 = vdwg.mxu0
    %v1334 = vand.u32 %v76, 4294901760
    %v1335 = vsub.f32 %v76, %v1334
    %1336 = vmatprep.subr.mxu0 %v1335
    %v1337 = vand.u32 %v75, 4294901760
    %v1338 = vsub.f32 %v75, %v1337
    %1339 = vmatpush1.msra.mxu0 %v1338
    %v1340 = vand.u32 %v78, 4294901760
    %v1341 = vsub.f32 %v78, %v1340
    %1342 = vmatprep.subr.mxu0 %v1341
    %v1343 = vand.u32 %v77, 4294901760
    %v1344 = vsub.f32 %v77, %v1343
    %1345 = vmatpush1.msra.mxu0 %v1344
    %v1346 = vand.u32 %v80, 4294901760
    %v1347 = vsub.f32 %v80, %v1346
    %1348 = vmatprep.subr.mxu0 %v1347
    %v1349 = vand.u32 %v79, 4294901760
    %v1350 = vsub.f32 %v79, %v1349
    %1351 = vmatpush1.msra.mxu0 %v1350
    %v1352 = vand.u32 %v82, 4294901760
    %v1353 = vsub.f32 %v82, %v1352
    %1354 = vmatprep.subr.mxu0 %v1353
    %v1355 = vand.u32 %v81, 4294901760
    %v1356 = vsub.f32 %v81, %v1355
    %1357 = vmatpush1.msra.mxu0 %v1356
    %v1358 = vand.u32 %v84, 4294901760
    %v1359 = vsub.f32 %v84, %v1358
    %1360 = vmatprep.subr.mxu0 %v1359
    %v1361 = vand.u32 %v83, 4294901760
    %v1362 = vsub.f32 %v83, %v1361
    %1363 = vmatpush1.msra.mxu0 %v1362
    %v1364 = vand.u32 %v86, 4294901760
    %v1365 = vsub.f32 %v86, %v1364
    %1366 = vmatprep.subr.mxu0 %v1365
    %v1367 = vand.u32 %v85, 4294901760
    %v1368 = vsub.f32 %v85, %v1367
    %1369 = vmatpush1.msra.mxu0 %v1368
    %v1370 = vand.u32 %v88, 4294901760
    %v1371 = vsub.f32 %v88, %v1370
    %1372 = vmatprep.subr.mxu0 %v1371
    %v1373 = vand.u32 %v87, 4294901760
    %v1374 = vsub.f32 %v87, %v1373
    %1375 = vmatpush1.msra.mxu0 %v1374
    %v1376 = vand.u32 %v90, 4294901760
    %v1377 = vsub.f32 %v90, %v1376
    %1378 = vmatprep.subr.mxu0 %v1377
    %v1379 = vand.u32 %v89, 4294901760
    %v1380 = vsub.f32 %v89, %v1379
    %1381 = vmatpush1.msra.mxu0 %v1380
    %v1382 = vand.u32 %v92, 4294901760
    %v1383 = vsub.f32 %v92, %v1382
    %1384 = vmatprep.subr.mxu0 %v1383
    %v1385 = vand.u32 %v91, 4294901760
    %v1386 = vsub.f32 %v91, %v1385
    %1387 = vmatpush1.msra.mxu0 %v1386
    %v1388 = vand.u32 %v94, 4294901760
    %v1389 = vsub.f32 %v94, %v1388
    %1390 = vmatprep.subr.mxu0 %v1389
    %v1391 = vand.u32 %v93, 4294901760
    %v1392 = vsub.f32 %v93, %v1391
    %1393 = vmatpush1.msra.mxu0 %v1392
    %v1394 = vand.u32 %v96, 4294901760
    %v1395 = vsub.f32 %v96, %v1394
    %1396 = vmatprep.subr.mxu0 %v1395
    %v1397 = vand.u32 %v95, 4294901760
    %v1398 = vsub.f32 %v95, %v1397
    %1399 = vmatpush1.msra.mxu0 %v1398
    %v1400 = vand.u32 %v98, 4294901760
    %v1401 = vsub.f32 %v98, %v1400
    %1402 = vmatprep.subr.mxu0 %v1401
    %v1403 = vand.u32 %v97, 4294901760
    %v1404 = vsub.f32 %v97, %v1403
    %1405 = vmatpush1.msra.mxu0 %v1404
    %v1406 = vand.u32 %v100, 4294901760
    %v1407 = vsub.f32 %v100, %v1406
    %1408 = vmatprep.subr.mxu0 %v1407
    %v1409 = vand.u32 %v99, 4294901760
    %v1410 = vsub.f32 %v99, %v1409
    %1411 = vmatpush1.msra.mxu0 %v1410
    %v1412 = vand.u32 %v102, 4294901760
    %v1413 = vsub.f32 %v102, %v1412
    %1414 = vmatprep.subr.mxu0 %v1413
    %v1415 = vand.u32 %v101, 4294901760
    %v1416 = vsub.f32 %v101, %v1415
    %1417 = vmatpush1.msra.mxu0 %v1416
    %v1418 = vand.u32 %v104, 4294901760
    %v1419 = vsub.f32 %v104, %v1418
    %1420 = vmatprep.subr.mxu0 %v1419
    %v1421 = vand.u32 %v103, 4294901760
    %v1422 = vsub.f32 %v103, %v1421
    %1423 = vmatpush1.msra.mxu0 %v1422
    %v1424 = vand.u32 %v106, 4294901760
    %v1425 = vsub.f32 %v106, %v1424
    %1426 = vmatprep.subr.mxu0 %v1425
    %v1427 = vand.u32 %v105, 4294901760
    %v1428 = vsub.f32 %v105, %v1427
    %1429 = vmatpush1.msra.mxu0 %v1428
    %1430 = vmatprep.subr.mxu0 0.0
    %1431 = vmatpush1.msra.mxu0 0.0
    %1432 = vmatprep.subr.mxu0 0.0
    %1433 = vmatpush1.msra.mxu0 0.0
    %1434 = vmatprep.subr.mxu0 0.0
    %1435 = vmatpush1.msra.mxu0 0.0
    %1436 = vmatprep.subr.mxu0 0.0
    %1437 = vmatpush1.msra.mxu0 0.0
    %1438 = vmatprep.subr.mxu0 0.0
    %1439 = vmatpush1.msra.mxu0 0.0
    %1440 = vmatprep.subr.mxu0 0.0
    %1441 = vmatpush1.msra.mxu0 0.0
    %1442 = vmatprep.subr.mxu0 0.0
    %1443 = vmatpush1.msra.mxu0 0.0
    %1444 = vmatprep.subr.mxu0 0.0
    %1445 = vmatpush1.msra.mxu0 0.0
    %1446 = vmatprep.subr.mxu0 0.0
    %1447 = vmatpush1.msra.mxu0 0.0
    %1448 = vmatprep.subr.mxu0 0.0
    %1449 = vmatpush1.msra.mxu0 0.0
    %1450 = vmatprep.subr.mxu0 0.0
    %1451 = vmatpush1.msra.mxu0 0.0
    %1452 = vmatprep.subr.mxu0 0.0
    %1453 = vmatpush1.msra.mxu0 0.0
    %1454 = vmatprep.subr.mxu0 0.0
    %1455 = vmatpush1.msra.mxu0 0.0
    %1456 = vmatprep.subr.mxu0 0.0
    %1457 = vmatpush1.msra.mxu0 0.0
    %1458 = vmatprep.subr.mxu0 0.0
    %1459 = vmatpush1.msra.mxu0 0.0
    %1460 = vmatprep.subr.mxu0 0.0
    %1461 = vmatpush1.msra.mxu0 0.0
    %1462 = vmatprep.mubr.f32.mxu0 0.0
    %v1463 = vand.u32 %v74, 4294901760
    %v1464 = vsub.f32 %v74, %v1463
    %1465 = vmatmul.mubr.f32.gmra.mrb[0].mxu0 %v1464
    %v1466 = vpop.f32.mrb[0].mxu0
    %v1467 = vadd.f32 %v1330, %v1466
    %v1468 = vpop.f32.mrb[0].mxu0
    %v1469 = vadd.f32 %v1332, %v1468
    %1470 = vdwg.mxu0
    %v1471 = vand.u32 %v76, 4294901760
    %1472 = vmatprep.subr.mxu0 %v1471
    %v1473 = vand.u32 %v75, 4294901760
    %1474 = vmatpush1.msra.mxu0 %v1473
    %v1475 = vand.u32 %v78, 4294901760
    %1476 = vmatprep.subr.mxu0 %v1475
    %v1477 = vand.u32 %v77, 4294901760
    %1478 = vmatpush1.msra.mxu0 %v1477
    %v1479 = vand.u32 %v80, 4294901760
    %1480 = vmatprep.subr.mxu0 %v1479
    %v1481 = vand.u32 %v79, 4294901760
    %1482 = vmatpush1.msra.mxu0 %v1481
    %v1483 = vand.u32 %v82, 4294901760
    %1484 = vmatprep.subr.mxu0 %v1483
    %v1485 = vand.u32 %v81, 4294901760
    %1486 = vmatpush1.msra.mxu0 %v1485
    %v1487 = vand.u32 %v84, 4294901760
    %1488 = vmatprep.subr.mxu0 %v1487
    %v1489 = vand.u32 %v83, 4294901760
    %1490 = vmatpush1.msra.mxu0 %v1489
    %v1491 = vand.u32 %v86, 4294901760
    %1492 = vmatprep.subr.mxu0 %v1491
    %v1493 = vand.u32 %v85, 4294901760
    %1494 = vmatpush1.msra.mxu0 %v1493
    %v1495 = vand.u32 %v88, 4294901760
    %1496 = vmatprep.subr.mxu0 %v1495
    %v1497 = vand.u32 %v87, 4294901760
    %1498 = vmatpush1.msra.mxu0 %v1497
    %v1499 = vand.u32 %v90, 4294901760
    %1500 = vmatprep.subr.mxu0 %v1499
    %v1501 = vand.u32 %v89, 4294901760
    %1502 = vmatpush1.msra.mxu0 %v1501
    %v1503 = vand.u32 %v92, 4294901760
    %1504 = vmatprep.subr.mxu0 %v1503
    %v1505 = vand.u32 %v91, 4294901760
    %1506 = vmatpush1.msra.mxu0 %v1505
    %v1507 = vand.u32 %v94, 4294901760
    %1508 = vmatprep.subr.mxu0 %v1507
    %v1509 = vand.u32 %v93, 4294901760
    %1510 = vmatpush1.msra.mxu0 %v1509
    %v1511 = vand.u32 %v96, 4294901760
    %1512 = vmatprep.subr.mxu0 %v1511
    %v1513 = vand.u32 %v95, 4294901760
    %1514 = vmatpush1.msra.mxu0 %v1513
    %v1515 = vand.u32 %v98, 4294901760
    %1516 = vmatprep.subr.mxu0 %v1515
    %v1517 = vand.u32 %v97, 4294901760
    %1518 = vmatpush1.msra.mxu0 %v1517
    %v1519 = vand.u32 %v100, 4294901760
    %1520 = vmatprep.subr.mxu0 %v1519
    %v1521 = vand.u32 %v99, 4294901760
    %1522 = vmatpush1.msra.mxu0 %v1521
    %v1523 = vand.u32 %v102, 4294901760
    %1524 = vmatprep.subr.mxu0 %v1523
    %v1525 = vand.u32 %v101, 4294901760
    %1526 = vmatpush1.msra.mxu0 %v1525
    %v1527 = vand.u32 %v104, 4294901760
    %1528 = vmatprep.subr.mxu0 %v1527
    %v1529 = vand.u32 %v103, 4294901760
    %1530 = vmatpush1.msra.mxu0 %v1529
    %v1531 = vand.u32 %v106, 4294901760
    %1532 = vmatprep.subr.mxu0 %v1531
    %v1533 = vand.u32 %v105, 4294901760
    %1534 = vmatpush1.msra.mxu0 %v1533
    %1535 = vmatprep.subr.mxu0 0.0
    %1536 = vmatpush1.msra.mxu0 0.0
    %1537 = vmatprep.subr.mxu0 0.0
    %1538 = vmatpush1.msra.mxu0 0.0
    %1539 = vmatprep.subr.mxu0 0.0
    %1540 = vmatpush1.msra.mxu0 0.0
    %1541 = vmatprep.subr.mxu0 0.0
    %1542 = vmatpush1.msra.mxu0 0.0
    %1543 = vmatprep.subr.mxu0 0.0
    %1544 = vmatpush1.msra.mxu0 0.0
    %1545 = vmatprep.subr.mxu0 0.0
    %1546 = vmatpush1.msra.mxu0 0.0
    %1547 = vmatprep.subr.mxu0 0.0
    %1548 = vmatpush1.msra.mxu0 0.0
    %1549 = vmatprep.subr.mxu0 0.0
    %1550 = vmatpush1.msra.mxu0 0.0
    %1551 = vmatprep.subr.mxu0 0.0
    %1552 = vmatpush1.msra.mxu0 0.0
    %1553 = vmatprep.subr.mxu0 0.0
    %1554 = vmatpush1.msra.mxu0 0.0
    %1555 = vmatprep.subr.mxu0 0.0
    %1556 = vmatpush1.msra.mxu0 0.0
    %1557 = vmatprep.subr.mxu0 0.0
    %1558 = vmatpush1.msra.mxu0 0.0
    %1559 = vmatprep.subr.mxu0 0.0
    %1560 = vmatpush1.msra.mxu0 0.0
    %1561 = vmatprep.subr.mxu0 0.0
    %1562 = vmatpush1.msra.mxu0 0.0
    %1563 = vmatprep.subr.mxu0 0.0
    %1564 = vmatpush1.msra.mxu0 0.0
    %1565 = vmatprep.subr.mxu0 0.0
    %1566 = vmatpush1.msra.mxu0 0.0
    %1567 = vmatprep.mubr.f32.mxu0 0.0
    %v1568 = vand.u32 %v74, 4294901760
    %v1569 = vsub.f32 %v74, %v1568
    %v1570 = vand.u32 %v1569, 4294901760
    %1571 = vmatmul.mubr.f32.gmra.mrb[0].mxu0 %v1570
    %v1572 = vpop.f32.mrb[0].mxu0
    %v1573 = vadd.f32 %v1467, %v1572
    %v1574 = vpop.f32.mrb[0].mxu0
    %v1575 = vadd.f32 %v1469, %v1574
    %1576 = vdwg.mxu0
    %v1577 = vand.u32 %v76, 4294901760
    %v1578 = vsub.f32 %v76, %v1577
    %v1579 = vand.u32 %v1578, 4294901760
    %1580 = vmatprep.subr.mxu0 %v1579
    %v1581 = vand.u32 %v75, 4294901760
    %v1582 = vsub.f32 %v75, %v1581
    %v1583 = vand.u32 %v1582, 4294901760
    %1584 = vmatpush1.msra.mxu0 %v1583
    %v1585 = vand.u32 %v78, 4294901760
    %v1586 = vsub.f32 %v78, %v1585
    %v1587 = vand.u32 %v1586, 4294901760
    %1588 = vmatprep.subr.mxu0 %v1587
    %v1589 = vand.u32 %v77, 4294901760
    %v1590 = vsub.f32 %v77, %v1589
    %v1591 = vand.u32 %v1590, 4294901760
    %1592 = vmatpush1.msra.mxu0 %v1591
    %v1593 = vand.u32 %v80, 4294901760
    %v1594 = vsub.f32 %v80, %v1593
    %v1595 = vand.u32 %v1594, 4294901760
    %1596 = vmatprep.subr.mxu0 %v1595
    %v1597 = vand.u32 %v79, 4294901760
    %v1598 = vsub.f32 %v79, %v1597
    %v1599 = vand.u32 %v1598, 4294901760
    %1600 = vmatpush1.msra.mxu0 %v1599
    %v1601 = vand.u32 %v82, 4294901760
    %v1602 = vsub.f32 %v82, %v1601
    %v1603 = vand.u32 %v1602, 4294901760
    %1604 = vmatprep.subr.mxu0 %v1603
    %v1605 = vand.u32 %v81, 4294901760
    %v1606 = vsub.f32 %v81, %v1605
    %v1607 = vand.u32 %v1606, 4294901760
    %1608 = vmatpush1.msra.mxu0 %v1607
    %v1609 = vand.u32 %v84, 4294901760
    %v1610 = vsub.f32 %v84, %v1609
    %v1611 = vand.u32 %v1610, 4294901760
    %1612 = vmatprep.subr.mxu0 %v1611
    %v1613 = vand.u32 %v83, 4294901760
    %v1614 = vsub.f32 %v83, %v1613
    %v1615 = vand.u32 %v1614, 4294901760
    %1616 = vmatpush1.msra.mxu0 %v1615
    %v1617 = vand.u32 %v86, 4294901760
    %v1618 = vsub.f32 %v86, %v1617
    %v1619 = vand.u32 %v1618, 4294901760
    %1620 = vmatprep.subr.mxu0 %v1619
    %v1621 = vand.u32 %v85, 4294901760
    %v1622 = vsub.f32 %v85, %v1621
    %v1623 = vand.u32 %v1622, 4294901760
    %1624 = vmatpush1.msra.mxu0 %v1623
    %v1625 = vand.u32 %v88, 4294901760
    %v1626 = vsub.f32 %v88, %v1625
    %v1627 = vand.u32 %v1626, 4294901760
    %1628 = vmatprep.subr.mxu0 %v1627
    %v1629 = vand.u32 %v87, 4294901760
    %v1630 = vsub.f32 %v87, %v1629
    %v1631 = vand.u32 %v1630, 4294901760
    %1632 = vmatpush1.msra.mxu0 %v1631
    %v1633 = vand.u32 %v90, 4294901760
    %v1634 = vsub.f32 %v90, %v1633
    %v1635 = vand.u32 %v1634, 4294901760
    %1636 = vmatprep.subr.mxu0 %v1635
    %v1637 = vand.u32 %v89, 4294901760
    %v1638 = vsub.f32 %v89, %v1637
    %v1639 = vand.u32 %v1638, 4294901760
    %1640 = vmatpush1.msra.mxu0 %v1639
    %v1641 = vand.u32 %v92, 4294901760
    %v1642 = vsub.f32 %v92, %v1641
    %v1643 = vand.u32 %v1642, 4294901760
    %1644 = vmatprep.subr.mxu0 %v1643
    %v1645 = vand.u32 %v91, 4294901760
    %v1646 = vsub.f32 %v91, %v1645
    %v1647 = vand.u32 %v1646, 4294901760
    %1648 = vmatpush1.msra.mxu0 %v1647
    %v1649 = vand.u32 %v94, 4294901760
    %v1650 = vsub.f32 %v94, %v1649
    %v1651 = vand.u32 %v1650, 4294901760
    %1652 = vmatprep.subr.mxu0 %v1651
    %v1653 = vand.u32 %v93, 4294901760
    %v1654 = vsub.f32 %v93, %v1653
    %v1655 = vand.u32 %v1654, 4294901760
    %1656 = vmatpush1.msra.mxu0 %v1655
    %v1657 = vand.u32 %v96, 4294901760
    %v1658 = vsub.f32 %v96, %v1657
    %v1659 = vand.u32 %v1658, 4294901760
    %1660 = vmatprep.subr.mxu0 %v1659
    %v1661 = vand.u32 %v95, 4294901760
    %v1662 = vsub.f32 %v95, %v1661
    %v1663 = vand.u32 %v1662, 4294901760
    %1664 = vmatpush1.msra.mxu0 %v1663
    %v1665 = vand.u32 %v98, 4294901760
    %v1666 = vsub.f32 %v98, %v1665
    %v1667 = vand.u32 %v1666, 4294901760
    %1668 = vmatprep.subr.mxu0 %v1667
    %v1669 = vand.u32 %v97, 4294901760
    %v1670 = vsub.f32 %v97, %v1669
    %v1671 = vand.u32 %v1670, 4294901760
    %1672 = vmatpush1.msra.mxu0 %v1671
    %v1673 = vand.u32 %v100, 4294901760
    %v1674 = vsub.f32 %v100, %v1673
    %v1675 = vand.u32 %v1674, 4294901760
    %1676 = vmatprep.subr.mxu0 %v1675
    %v1677 = vand.u32 %v99, 4294901760
    %v1678 = vsub.f32 %v99, %v1677
    %v1679 = vand.u32 %v1678, 4294901760
    %1680 = vmatpush1.msra.mxu0 %v1679
    %v1681 = vand.u32 %v102, 4294901760
    %v1682 = vsub.f32 %v102, %v1681
    %v1683 = vand.u32 %v1682, 4294901760
    %1684 = vmatprep.subr.mxu0 %v1683
    %v1685 = vand.u32 %v101, 4294901760
    %v1686 = vsub.f32 %v101, %v1685
    %v1687 = vand.u32 %v1686, 4294901760
    %1688 = vmatpush1.msra.mxu0 %v1687
    %v1689 = vand.u32 %v104, 4294901760
    %v1690 = vsub.f32 %v104, %v1689
    %v1691 = vand.u32 %v1690, 4294901760
    %1692 = vmatprep.subr.mxu0 %v1691
    %v1693 = vand.u32 %v103, 4294901760
    %v1694 = vsub.f32 %v103, %v1693
    %v1695 = vand.u32 %v1694, 4294901760
    %1696 = vmatpush1.msra.mxu0 %v1695
    %v1697 = vand.u32 %v106, 4294901760
    %v1698 = vsub.f32 %v106, %v1697
    %v1699 = vand.u32 %v1698, 4294901760
    %1700 = vmatprep.subr.mxu0 %v1699
    %v1701 = vand.u32 %v105, 4294901760
    %v1702 = vsub.f32 %v105, %v1701
    %v1703 = vand.u32 %v1702, 4294901760
    %1704 = vmatpush1.msra.mxu0 %v1703
    %1705 = vmatprep.subr.mxu0 0.0
    %1706 = vmatpush1.msra.mxu0 0.0
    %1707 = vmatprep.subr.mxu0 0.0
    %1708 = vmatpush1.msra.mxu0 0.0
    %1709 = vmatprep.subr.mxu0 0.0
    %1710 = vmatpush1.msra.mxu0 0.0
    %1711 = vmatprep.subr.mxu0 0.0
    %1712 = vmatpush1.msra.mxu0 0.0
    %1713 = vmatprep.subr.mxu0 0.0
    %1714 = vmatpush1.msra.mxu0 0.0
    %1715 = vmatprep.subr.mxu0 0.0
    %1716 = vmatpush1.msra.mxu0 0.0
    %1717 = vmatprep.subr.mxu0 0.0
    %1718 = vmatpush1.msra.mxu0 0.0
    %1719 = vmatprep.subr.mxu0 0.0
    %1720 = vmatpush1.msra.mxu0 0.0
    %1721 = vmatprep.subr.mxu0 0.0
    %1722 = vmatpush1.msra.mxu0 0.0
    %1723 = vmatprep.subr.mxu0 0.0
    %1724 = vmatpush1.msra.mxu0 0.0
    %1725 = vmatprep.subr.mxu0 0.0
    %1726 = vmatpush1.msra.mxu0 0.0
    %1727 = vmatprep.subr.mxu0 0.0
    %1728 = vmatpush1.msra.mxu0 0.0
    %1729 = vmatprep.subr.mxu0 0.0
    %1730 = vmatpush1.msra.mxu0 0.0
    %1731 = vmatprep.subr.mxu0 0.0
    %1732 = vmatpush1.msra.mxu0 0.0
    %1733 = vmatprep.subr.mxu0 0.0
    %1734 = vmatpush1.msra.mxu0 0.0
    %1735 = vmatprep.subr.mxu0 0.0
    %1736 = vmatpush1.msra.mxu0 0.0
    %1737 = vmatprep.mubr.f32.mxu0 0.0
    %v1738 = vand.u32 %v74, 4294901760
    %1739 = vmatmul.mubr.f32.gmra.mrb[0].mxu0 %v1738
    %v1740 = vpop.f32.mrb[0].mxu0
    %v1741 = vadd.f32 %v1573, %v1740
    %v1742 = vpop.f32.mrb[0].mxu0
    %v1743 = vadd.f32 %v1575, %v1742
    %1744 = vdwg.mxu0
    %v1745 = vand.u32 %v76, 4294901760
    %1746 = vmatprep.subr.mxu0 %v1745
    %v1747 = vand.u32 %v75, 4294901760
    %1748 = vmatpush1.msra.mxu0 %v1747
    %v1749 = vand.u32 %v78, 4294901760
    %1750 = vmatprep.subr.mxu0 %v1749
    %v1751 = vand.u32 %v77, 4294901760
    %1752 = vmatpush1.msra.mxu0 %v1751
    %v1753 = vand.u32 %v80, 4294901760
    %1754 = vmatprep.subr.mxu0 %v1753
    %v1755 = vand.u32 %v79, 4294901760
    %1756 = vmatpush1.msra.mxu0 %v1755
    %v1757 = vand.u32 %v82, 4294901760
    %1758 = vmatprep.subr.mxu0 %v1757
    %v1759 = vand.u32 %v81, 4294901760
    %1760 = vmatpush1.msra.mxu0 %v1759
    %v1761 = vand.u32 %v84, 4294901760
    %1762 = vmatprep.subr.mxu0 %v1761
    %v1763 = vand.u32 %v83, 4294901760
    %1764 = vmatpush1.msra.mxu0 %v1763
    %v1765 = vand.u32 %v86, 4294901760
    %1766 = vmatprep.subr.mxu0 %v1765
    %v1767 = vand.u32 %v85, 4294901760
    %1768 = vmatpush1.msra.mxu0 %v1767
    %v1769 = vand.u32 %v88, 4294901760
    %1770 = vmatprep.subr.mxu0 %v1769
    %v1771 = vand.u32 %v87, 4294901760
    %1772 = vmatpush1.msra.mxu0 %v1771
    %v1773 = vand.u32 %v90, 4294901760
    %1774 = vmatprep.subr.mxu0 %v1773
    %v1775 = vand.u32 %v89, 4294901760
    %1776 = vmatpush1.msra.mxu0 %v1775
    %v1777 = vand.u32 %v92, 4294901760
    %1778 = vmatprep.subr.mxu0 %v1777
    %v1779 = vand.u32 %v91, 4294901760
    %1780 = vmatpush1.msra.mxu0 %v1779
    %v1781 = vand.u32 %v94, 4294901760
    %1782 = vmatprep.subr.mxu0 %v1781
    %v1783 = vand.u32 %v93, 4294901760
    %1784 = vmatpush1.msra.mxu0 %v1783
    %v1785 = vand.u32 %v96, 4294901760
    %1786 = vmatprep.subr.mxu0 %v1785
    %v1787 = vand.u32 %v95, 4294901760
    %1788 = vmatpush1.msra.mxu0 %v1787
    %v1789 = vand.u32 %v98, 4294901760
    %1790 = vmatprep.subr.mxu0 %v1789
    %v1791 = vand.u32 %v97, 4294901760
    %1792 = vmatpush1.msra.mxu0 %v1791
    %v1793 = vand.u32 %v100, 4294901760
    %1794 = vmatprep.subr.mxu0 %v1793
    %v1795 = vand.u32 %v99, 4294901760
    %1796 = vmatpush1.msra.mxu0 %v1795
    %v1797 = vand.u32 %v102, 4294901760
    %1798 = vmatprep.subr.mxu0 %v1797
    %v1799 = vand.u32 %v101, 4294901760
    %1800 = vmatpush1.msra.mxu0 %v1799
    %v1801 = vand.u32 %v104, 4294901760
    %1802 = vmatprep.subr.mxu0 %v1801
    %v1803 = vand.u32 %v103, 4294901760
    %1804 = vmatpush1.msra.mxu0 %v1803
    %v1805 = vand.u32 %v106, 4294901760
    %1806 = vmatprep.subr.mxu0 %v1805
    %v1807 = vand.u32 %v105, 4294901760
    %1808 = vmatpush1.msra.mxu0 %v1807
    %1809 = vmatprep.subr.mxu0 0.0
    %1810 = vmatpush1.msra.mxu0 0.0
    %1811 = vmatprep.subr.mxu0 0.0
    %1812 = vmatpush1.msra.mxu0 0.0
    %1813 = vmatprep.subr.mxu0 0.0
    %1814 = vmatpush1.msra.mxu0 0.0
    %1815 = vmatprep.subr.mxu0 0.0
    %1816 = vmatpush1.msra.mxu0 0.0
    %1817 = vmatprep.subr.mxu0 0.0
    %1818 = vmatpush1.msra.mxu0 0.0
    %1819 = vmatprep.subr.mxu0 0.0
    %1820 = vmatpush1.msra.mxu0 0.0
    %1821 = vmatprep.subr.mxu0 0.0
    %1822 = vmatpush1.msra.mxu0 0.0
    %1823 = vmatprep.subr.mxu0 0.0
    %1824 = vmatpush1.msra.mxu0 0.0
    %1825 = vmatprep.subr.mxu0 0.0
    %1826 = vmatpush1.msra.mxu0 0.0
    %1827 = vmatprep.subr.mxu0 0.0
    %1828 = vmatpush1.msra.mxu0 0.0
    %1829 = vmatprep.subr.mxu0 0.0
    %1830 = vmatpush1.msra.mxu0 0.0
    %1831 = vmatprep.subr.mxu0 0.0
    %1832 = vmatpush1.msra.mxu0 0.0
    %1833 = vmatprep.subr.mxu0 0.0
    %1834 = vmatpush1.msra.mxu0 0.0
    %1835 = vmatprep.subr.mxu0 0.0
    %1836 = vmatpush1.msra.mxu0 0.0
    %1837 = vmatprep.subr.mxu0 0.0
    %1838 = vmatpush1.msra.mxu0 0.0
    %1839 = vmatprep.subr.mxu0 0.0
    %1840 = vmatpush1.msra.mxu0 0.0
    %1841 = vmatprep.mubr.f32.mxu0 0.0
    %v1842 = vand.u32 %v74, 4294901760
    %1843 = vmatmul.mubr.f32.gmra.mrb[0].mxu0 %v1842
    %v1844 = vpop.f32.mrb[0].mxu0
    %v1845 = vadd.f32 %v1741, %v1844
    %v1846 = vpop.f32.mrb[0].mxu0
    %v1847 = vadd.f32 %v1743, %v1846
    %1848 = vdwg.mxu0
    %v1849 = vld [vmem:[%s3] sm:$0x3]
    %v1851 = vlaneseq
    %v1852 = vshrl.u32 %v1851, 7
    %v1853 = vsub.s32 0, %v1852
    %v1854 = vrot.slane %v1849, %v1853
    %v1855 = vlaneseq
    %v1856 = vshrl.u32 %v1855, 7
    %v1857 = vsub.s32 1, %v1856
    %v1858 = vrot.slane %v1849, %v1857
    %v1861 = vmax.f32 %v1845, %v1854
    %v1862 = vmax.f32 %v1847, %v1858
    %1863 = vst [vmem:[%s4] sm:$0xff] %v1861
    %vm1864 = vcmask 785408
    %1865 = vst.msk [vmem:[%s4 + $0x8] sm:$0xff] %vm1864, %v1862
    // Predicated region
    $region26: #{forward.1} parent=1 // pred_check
      _
    $region27: #{forward.1} parent=1 // pred_check_branch
      %1867 = sbr.rel (0) target = $region29
    $region28: #{forward.1} parent=1 // pred_region
      _
    $region29: #{forward.1} parent=1 // pred_fallthru
      _
    // Predicated region
    $region30: #{forward.1} parent=1 // pred_check
      _
    $region31: #{forward.1} parent=1 // pred_check_branch
      %1869 = sbr.rel (0) target = $region33
    $region32: #{forward.1} parent=1 // pred_region
      _
    $region33: #{forward.1} parent=1 // pred_fallthru
      _
    %1870 = vsyncpa [#allocation3], 1
    %1871 = vsyncpa [#allocation5], 1

</llo_original>
